<compile_context>
chip_gen: v5e
topology: v5e:2x2
jax: 0.10.0
libtpu: 0.0.40
codegen_flags: <defaults>
</compile_context>

<pallas_src>
import functools

import numpy as np
import jax
import jax.numpy as jnp
from jax.experimental import pallas as pl
from jax.experimental.pallas import tpu as pltpu


# ----------------------------------------------------------------------------
# Pallas kernel
# ----------------------------------------------------------------------------
def merge_kernel(x1_ref, x2_ref, w1_ref, b1_ref, w2_ref, b2_ref, mask_ref,
                 o_ref, *, img_w, nb):
    """Fused 3x3-conv+ReLU -> concat 1x1-conv over one block of Nb images.

    x1_ref:   (Nb, C1, P)       bf16   P = H*W on the lane axis
    x2_ref:   (Nb, C2, P)       bf16
    w1_ref:   (Cm, 9*C1)        bf16   tap-major im2col weights
    b1_ref:   (Cm, 1)           f32
    w2_ref:   (Cout, Cm+C2)     bf16   1x1 weights on the [out1, x2] concat
    b2_ref:   (Cout, 1)         f32
    mask_ref: (9, 1, Nb*P)      f32    0/1 border masks per 3x3 tap, per image
    o_ref:    (Nb, Cout, P)     out dtype
    """
    p_img = x1_ref.shape[-1]              # H*W of one image
    pb = nb * p_img                       # folded lane width

    # ---- lane-fold the Nb images of this block: (Nb, C, P) -> (C, Nb*P) ----
    if nb == 1:
        x1 = x1_ref[0]                    # (C1, Pb) bf16
        x2 = x2_ref[0]                    # (C2, Pb) bf16
    else:
        x1 = jnp.concatenate([x1_ref[i] for i in range(nb)], axis=1)
        x2 = jnp.concatenate([x2_ref[i] for i in range(nb)], axis=1)

    # ---- module1: 3x3 conv as ONE im2col matmul -----------------------------
    # Rolls/mask-muls in f32 (safe on v5e, which has no bf16 VPU); taps cast to
    # bf16 right before the MXU.  rolled[:, p] == x1[:, (p + s) % Pb]; the mask
    # zeroes every position whose source pixel is off-image, which also kills
    # all cross-image reads created by the lane folding.
    x1f = x1.astype(jnp.float32)
    taps = []
    for dy in range(3):
        for dx in range(3):
            k = dy * 3 + dx
            s = (dy - 1) * img_w + (dx - 1)        # lane shift for this tap
            if s == 0:
                taps.append(x1)                    # center tap: mask all-ones
            else:
                t = pltpu.roll(x1f, (-s) % pb, axis=1) * mask_ref[k]
                taps.append(t.astype(jnp.bfloat16))
    im2col = jnp.concatenate(taps, axis=0)         # (9*C1, Pb) bf16

    acc = jnp.dot(w1_ref[...], im2col,
                  preferred_element_type=jnp.float32)          # (Cm, Pb) f32
    out1 = jnp.maximum(acc + b1_ref[...], 0.0)                 # bias + ReLU

    # ---- module2: concat([out1, x2], channel) -> single 1x1-conv matmul -----
    cat = jnp.concatenate([out1.astype(jnp.bfloat16), x2], axis=0)  # (Cm+C2, Pb)
    out2 = (jnp.dot(w2_ref[...], cat, preferred_element_type=jnp.float32)
            + b2_ref[...])                                     # (Cout, Pb) f32

    # ---- unfold and store per image (lane-aligned slices, dense stores) -----
    for i in range(nb):
        o_ref[i] = out2[:, i * p_img:(i + 1) * p_img].astype(o_ref.dtype)


# ----------------------------------------------------------------------------
# Block-size / VMEM heuristics
# ----------------------------------------------------------------------------
def _vmem_budget_bytes():
    """~75% of physical VMEM (≈48 MiB on v7x, ≈96 MiB on v5e/v6e)."""
    cap = 64 * 2**20                       # conservative fallback (v7x size)
    try:
        info = pltpu.get_tpu_info()
        cap_q = getattr(info, "vmem_capacity_bytes", None)
        if cap_q:
            cap = int(cap_q)
    except Exception:
        pass
    return int(0.75 * cap)


def _block_vmem_bytes(nb, p, c1, c2, cm, cout, out_itemsize):
    pb = nb * p
    streamed = pb * (c1 + c2) * 2              # bf16 inputs (double-buffered)
    out_blk = pb * cout * out_itemsize         # output block (double-buffered)
    im2col = pb * 9 * c1 * 2                   # bf16 im2col scratch
    cat = pb * (cm + c2) * 2                   # bf16 concat scratch
    inter = pb * (c1 + cm + cout) * 4          # f32 roll/acc/out2 temporaries
    return 2 * (streamed + out_blk) + im2col + cat + inter


def _pick_images_per_block(n, p, c1, c2, cm, cout, out_itemsize, budget):
    """Largest Nb dividing N s.t. the block fits the VMEM budget, the grid keeps
    >= 2 steps (pipelining overlap + both v7x TensorCores), and the folded lane
    width stays reasonable."""
    best = 1
    for nb in range(1, n + 1):
        if n % nb:
            continue
        if n >= 2 and n // nb < 2:
            continue
        if nb * p > 65536:
            continue
        if _block_vmem_bytes(nb, p, c1, c2, cm, cout, out_itemsize) > budget:
            continue
        best = nb
    return best


# ----------------------------------------------------------------------------
# Wrapper
# ----------------------------------------------------------------------------
@functools.partial(jax.jit, static_argnames=("images_per_block", "out_dtype"))
def merge_module_forward(x1, x2, w1, b1, w2, b2, *, images_per_block=None,
                         out_dtype=jnp.bfloat16):
    """MergeModule forward.

    x1: (N, C1, H, W)  input to module1
    x2: (N, C2, H, W)  second input to module2
    w1: (Cm, C1, 3, 3), b1: (Cm,)           -- module1 conv params
    w2: (Cout, Cm + C2, 1, 1), b2: (Cout,)  -- module2 concat-conv params
    returns: (N, Cout, H, W) in `out_dtype` (bf16 default; f32 available)
    """
    N, C1, H, W = x1.shape
    C2 = x2.shape[1]
    Cm = w1.shape[0]
    Cout = w2.shape[0]
    P = H * W
    out_itemsize = jnp.dtype(out_dtype).itemsize

    budget = _vmem_budget_bytes()
    Nb = images_per_block
    if Nb is None:
        Nb = _pick_images_per_block(N, P, C1, C2, Cm, Cout, out_itemsize, budget)
    assert N % Nb == 0, "images_per_block must divide the batch"
    G = N // Nb
    Pb = Nb * P

    # Free reshapes of the contiguous NCHW slabs; stream activations as bf16.
    x1r = x1.reshape(N, C1, P).astype(jnp.bfloat16)
    x2r = x2.reshape(N, C2, P).astype(jnp.bfloat16)

    # Tap-major im2col weights: w1_mat[cm, (dy*3+dx)*C1 + c1] = w1[cm, c1, dy, dx]
    w1_mat = jnp.transpose(w1, (0, 2, 3, 1)).reshape(Cm, 9 * C1).astype(jnp.bfloat16)
    w2_mat = w2.reshape(Cout, Cm + C2).astype(jnp.bfloat16)
    b1c = b1.reshape(Cm, 1).astype(jnp.float32)
    b2c = b2.reshape(Cout, 1).astype(jnp.float32)

    # Static 0/1 border masks, tiled across the Nb lane-folded images: for tap
    # (dy,dx) output pixel (h,w) reads input (h+dy-1, w+dx-1); zero where that
    # source pixel is off its own image.
    hh = np.arange(P) // W
    ww = np.arange(P) % W
    masks_np = np.zeros((9, 1, P), dtype=np.float32)
    for dy in range(3):
        for dx in range(3):
            ok = ((hh + dy - 1 >= 0) & (hh + dy - 1 < H) &
                  (ww + dx - 1 >= 0) & (ww + dx - 1 < W))
            masks_np[dy * 3 + dx, 0, :] = ok.astype(np.float32)
    masks = jnp.asarray(np.tile(masks_np, (1, 1, Nb)), dtype=jnp.float32)

    kernel = functools.partial(merge_kernel, img_w=W, nb=Nb)

    weight_bytes = ((w1_mat.size + w2_mat.size) * 2
                    + (Cm + Cout) * 4 + masks.size * 4)
    need = _block_vmem_bytes(Nb, P, C1, C2, Cm, Cout, out_itemsize) + weight_bytes
    vmem_limit = int(min(budget, max(32 * 2**20, 2 * need)))

    flops = 2 * N * P * (9 * C1 * Cm + (Cm + C2) * Cout)
    bytes_accessed = int(x1r.size * 2 + x2r.size * 2
                         + N * Cout * P * out_itemsize
                         + (w1_mat.size + w2_mat.size) * 2
                         + (Cm + Cout) * 4 + masks.size * 4)

    out = pl.pallas_call(
        kernel,
        out_shape=jax.ShapeDtypeStruct((N, Cout, P), out_dtype),
        grid_spec=pltpu.PrefetchScalarGridSpec(
            num_scalar_prefetch=0,
            grid=(G,),
            in_specs=[
                pl.BlockSpec((Nb, C1, P), lambda i: (i, 0, 0)),      # x1
                pl.BlockSpec((Nb, C2, P), lambda i: (i, 0, 0)),      # x2
                pl.BlockSpec((Cm, 9 * C1), lambda i: (0, 0)),        # w1 (im2col)
                pl.BlockSpec((Cm, 1), lambda i: (0, 0)),             # b1
                pl.BlockSpec((Cout, Cm + C2), lambda i: (0, 0)),     # w2
                pl.BlockSpec((Cout, 1), lambda i: (0, 0)),           # b2
                pl.BlockSpec((9, 1, Pb), lambda i: (0, 0, 0)),       # border masks
            ],
            out_specs=pl.BlockSpec((Nb, Cout, P), lambda i: (i, 0, 0)),
        ),
        compiler_params=pltpu.CompilerParams(
            dimension_semantics=("parallel",),
            vmem_limit_bytes=vmem_limit),
        cost_estimate=pl.CostEstimate(
            flops=flops, transcendentals=0, bytes_accessed=bytes_accessed),
    )(x1r, x2r, w1_mat, b1c, w2_mat, b2c, masks)

    # (N, Cout, H*W) is already the NCHW layout; this reshape is free.
    return out.reshape(N, Cout, H, W)


# ----------------------------------------------------------------------------
# Pure-JAX reference (sanity check)
# ----------------------------------------------------------------------------
def reference_forward(x1, x2, w1, b1, w2, b2):
    out1 = jax.lax.conv_general_dilated(
        x1, w1, window_strides=(1, 1), padding="SAME",
        dimension_numbers=("NCHW", "OIHW", "NCHW"),
        precision=jax.lax.Precision.HIGHEST)
    out1 = jax.nn.relu(out1 + b1.reshape(1, -1, 1, 1))
    cat = jnp.concatenate([out1, x2], axis=1)
    out2 = jax.lax.conv_general_dilated(
        cat, w2, window_strides=(1, 1), padding="SAME",
        dimension_numbers=("NCHW", "OIHW", "NCHW"),
        precision=jax.lax.Precision.HIGHEST)
    return out2 + b2.reshape(1, -1, 1, 1)


if __name__ == "__main__":
    # Small deterministic shapes: N=8, C1=C2=4, H=W=16, Cm=8, Cout=8
    N, C1, C2, H, W = 8, 4, 4, 16, 16
    Cm, Cout = 8, 8

    key = jax.random.PRNGKey(0)
    k1, k2, k3, k4, k5, k6 = jax.random.split(key, 6)
    x1 = jax.random.normal(k1, (N, C1, H, W), dtype=jnp.float32)
    x2 = jax.random.normal(k2, (N, C2, H, W), dtype=jnp.float32)
    w1 = 0.1 * jax.random.normal(k3, (Cm, C1, 3, 3), dtype=jnp.float32)
    b1 = 0.1 * jax.random.normal(k4, (Cm,), dtype=jnp.float32)
    w2 = 0.1 * jax.random.normal(k5, (Cout, Cm + C2, 1, 1), dtype=jnp.float32)
    b2 = 0.1 * jax.random.normal(k6, (Cout,), dtype=jnp.float32)

    out = merge_module_forward(x1, x2, w1, b1, w2, b2)
    out = jax.block_until_ready(out)
    assert out.shape == (N, Cout, H, W)
    outf = out.astype(jnp.float32)

    # Structural check: reference on the same bf16-rounded activations/weights
    # (kernel math beyond that is f32-accumulated), tight-ish tolerance.
    rd = lambda a: a.astype(jnp.bfloat16).astype(jnp.float32)
    ref_matched = reference_forward(rd(x1), rd(x2), rd(w1), b1, rd(w2), b2)
    assert jnp.allclose(outf, ref_matched, atol=2e-2, rtol=2e-2), \
        "mismatch vs bf16-rounded-operand reference"

    # Accuracy check against the full-precision f32 reference.
    ref = reference_forward(x1, x2, w1, b1, w2, b2)
    assert jnp.allclose(outf, ref, atol=6e-2, rtol=6e-2), \
        "mismatch vs f32 reference"

    # Exercise the nb==1 / f32-output path as well.
    out32 = merge_module_forward(x1, x2, w1, b1, w2, b2,
                                 images_per_block=1, out_dtype=jnp.float32)
    out32 = jax.block_until_ready(out32)
    assert out32.shape == (N, Cout, H, W)
    assert jnp.allclose(out32, ref, atol=6e-2, rtol=6e-2), \
        "mismatch vs f32 reference (nb=1, f32 out)"

    print("KERNEL_OK")
</pallas_src>

<mosaic_0001>
module attributes {stable_mosaic.version = 11 : i64} {
  func.func @merge_kernel(%arg0: i32, %arg1: memref<4x4x256xbf16, #tpu.memory_space<vmem>>, %arg2: memref<4x4x256xbf16, #tpu.memory_space<vmem>>, %arg3: memref<8x36xbf16, #tpu.memory_space<vmem>>, %arg4: memref<8x1xf32, #tpu.memory_space<vmem>>, %arg5: memref<8x12xbf16, #tpu.memory_space<vmem>>, %arg6: memref<8x1xf32, #tpu.memory_space<vmem>>, %arg7: memref<9x1x1024xf32, #tpu.memory_space<vmem>>, %arg8: memref<4x8x256xbf16, #tpu.memory_space<vmem>>) attributes {dimension_semantics = [#tpu.dimension_semantics<parallel>], iteration_bounds = array<i64: 2>, scalar_prefetch = 0 : i64, scratch_operands = 0 : i64, tpu.core_type = #tpu.core_type<tc>, window_params = [{transform_indices = @transform_0, window_bounds = array<i64: 4, 4, 256>}, {transform_indices = @transform_1, window_bounds = array<i64: 4, 4, 256>}, {pipeline_mode = #tpu.pipeline_mode<synchronous>, transform_indices = @transform_2, window_bounds = array<i64: 8, 36>}, {pipeline_mode = #tpu.pipeline_mode<synchronous>, transform_indices = @transform_3, window_bounds = array<i64: 8, 1>}, {pipeline_mode = #tpu.pipeline_mode<synchronous>, transform_indices = @transform_4, window_bounds = array<i64: 8, 12>}, {pipeline_mode = #tpu.pipeline_mode<synchronous>, transform_indices = @transform_5, window_bounds = array<i64: 8, 1>}, {pipeline_mode = #tpu.pipeline_mode<synchronous>, transform_indices = @transform_6, window_bounds = array<i64: 9, 1, 1024>}, {transform_indices = @transform_7, window_bounds = array<i64: 4, 8, 256>}]} {
    %c0 = arith.constant 0 : index
    %c0_0 = arith.constant 0 : index
    %c0_1 = arith.constant 0 : index
    %0 = vector.load %arg1[%c0, %c0_0, %c0_1] : memref<4x4x256xbf16, #tpu.memory_space<vmem>>, vector<1x4x256xbf16>
    %1 = vector.shape_cast %0 : vector<1x4x256xbf16> to vector<4x256xbf16>
    %c1 = arith.constant 1 : index
    %c0_2 = arith.constant 0 : index
    %c0_3 = arith.constant 0 : index
    %2 = vector.load %arg1[%c1, %c0_2, %c0_3] : memref<4x4x256xbf16, #tpu.memory_space<vmem>>, vector<1x4x256xbf16>
    %3 = vector.shape_cast %2 : vector<1x4x256xbf16> to vector<4x256xbf16>
    %c2 = arith.constant 2 : index
    %c0_4 = arith.constant 0 : index
    %c0_5 = arith.constant 0 : index
    %4 = vector.load %arg1[%c2, %c0_4, %c0_5] : memref<4x4x256xbf16, #tpu.memory_space<vmem>>, vector<1x4x256xbf16>
    %5 = vector.shape_cast %4 : vector<1x4x256xbf16> to vector<4x256xbf16>
    %c3 = arith.constant 3 : index
    %c0_6 = arith.constant 0 : index
    %c0_7 = arith.constant 0 : index
    %6 = vector.load %arg1[%c3, %c0_6, %c0_7] : memref<4x4x256xbf16, #tpu.memory_space<vmem>>, vector<1x4x256xbf16>
    %7 = vector.shape_cast %6 : vector<1x4x256xbf16> to vector<4x256xbf16>
    %8 = tpu.concatenate %1, %3, %5, %7 in 1 : vector<4x256xbf16>, vector<4x256xbf16>, vector<4x256xbf16>, vector<4x256xbf16> -> vector<4x1024xbf16>
    %c0_8 = arith.constant 0 : index
    %c0_9 = arith.constant 0 : index
    %c0_10 = arith.constant 0 : index
    %9 = vector.load %arg2[%c0_8, %c0_9, %c0_10] : memref<4x4x256xbf16, #tpu.memory_space<vmem>>, vector<1x4x256xbf16>
    %10 = vector.shape_cast %9 : vector<1x4x256xbf16> to vector<4x256xbf16>
    %c1_11 = arith.constant 1 : index
    %c0_12 = arith.constant 0 : index
    %c0_13 = arith.constant 0 : index
    %11 = vector.load %arg2[%c1_11, %c0_12, %c0_13] : memref<4x4x256xbf16, #tpu.memory_space<vmem>>, vector<1x4x256xbf16>
    %12 = vector.shape_cast %11 : vector<1x4x256xbf16> to vector<4x256xbf16>
    %c2_14 = arith.constant 2 : index
    %c0_15 = arith.constant 0 : index
    %c0_16 = arith.constant 0 : index
    %13 = vector.load %arg2[%c2_14, %c0_15, %c0_16] : memref<4x4x256xbf16, #tpu.memory_space<vmem>>, vector<1x4x256xbf16>
    %14 = vector.shape_cast %13 : vector<1x4x256xbf16> to vector<4x256xbf16>
    %c3_17 = arith.constant 3 : index
    %c0_18 = arith.constant 0 : index
    %c0_19 = arith.constant 0 : index
    %15 = vector.load %arg2[%c3_17, %c0_18, %c0_19] : memref<4x4x256xbf16, #tpu.memory_space<vmem>>, vector<1x4x256xbf16>
    %16 = vector.shape_cast %15 : vector<1x4x256xbf16> to vector<4x256xbf16>
    %17 = tpu.concatenate %10, %12, %14, %16 in 1 : vector<4x256xbf16>, vector<4x256xbf16>, vector<4x256xbf16>, vector<4x256xbf16> -> vector<4x1024xbf16>
    %18 = arith.extf %8 : vector<4x1024xbf16> to vector<4x1024xf32>
    %c17_i32 = arith.constant 17 : i32
    %19 = tpu.dynamic_rotate %18 by %c17_i32 dim 1 : vector<4x1024xf32>, i32 -> vector<4x1024xf32>
    %c0_20 = arith.constant 0 : index
    %c0_21 = arith.constant 0 : index
    %c0_22 = arith.constant 0 : index
    %20 = vector.load %arg7[%c0_20, %c0_21, %c0_22] : memref<9x1x1024xf32, #tpu.memory_space<vmem>>, vector<1x1x1024xf32>
    %21 = vector.shape_cast %20 : vector<1x1x1024xf32> to vector<1x1024xf32>
    %22 = vector.broadcast %21 : vector<1x1024xf32> to vector<4x1024xf32>
    %23 = arith.mulf %19, %22 : vector<4x1024xf32>
    %24 = arith.truncf %23 : vector<4x1024xf32> to vector<4x1024xbf16>
    %c16_i32 = arith.constant 16 : i32
    %25 = tpu.dynamic_rotate %18 by %c16_i32 dim 1 : vector<4x1024xf32>, i32 -> vector<4x1024xf32>
    %c1_23 = arith.constant 1 : index
    %c0_24 = arith.constant 0 : index
    %c0_25 = arith.constant 0 : index
    %26 = vector.load %arg7[%c1_23, %c0_24, %c0_25] : memref<9x1x1024xf32, #tpu.memory_space<vmem>>, vector<1x1x1024xf32>
    %27 = vector.shape_cast %26 : vector<1x1x1024xf32> to vector<1x1024xf32>
    %28 = vector.broadcast %27 : vector<1x1024xf32> to vector<4x1024xf32>
    %29 = arith.mulf %25, %28 : vector<4x1024xf32>
    %30 = arith.truncf %29 : vector<4x1024xf32> to vector<4x1024xbf16>
    %c15_i32 = arith.constant 15 : i32
    %31 = tpu.dynamic_rotate %18 by %c15_i32 dim 1 : vector<4x1024xf32>, i32 -> vector<4x1024xf32>
    %c2_26 = arith.constant 2 : index
    %c0_27 = arith.constant 0 : index
    %c0_28 = arith.constant 0 : index
    %32 = vector.load %arg7[%c2_26, %c0_27, %c0_28] : memref<9x1x1024xf32, #tpu.memory_space<vmem>>, vector<1x1x1024xf32>
    %33 = vector.shape_cast %32 : vector<1x1x1024xf32> to vector<1x1024xf32>
    %34 = vector.broadcast %33 : vector<1x1024xf32> to vector<4x1024xf32>
    %35 = arith.mulf %31, %34 : vector<4x1024xf32>
    %36 = arith.truncf %35 : vector<4x1024xf32> to vector<4x1024xbf16>
    %c1_i32 = arith.constant 1 : i32
    %37 = tpu.dynamic_rotate %18 by %c1_i32 dim 1 : vector<4x1024xf32>, i32 -> vector<4x1024xf32>
    %c3_29 = arith.constant 3 : index
    %c0_30 = arith.constant 0 : index
    %c0_31 = arith.constant 0 : index
    %38 = vector.load %arg7[%c3_29, %c0_30, %c0_31] : memref<9x1x1024xf32, #tpu.memory_space<vmem>>, vector<1x1x1024xf32>
    %39 = vector.shape_cast %38 : vector<1x1x1024xf32> to vector<1x1024xf32>
    %40 = vector.broadcast %39 : vector<1x1024xf32> to vector<4x1024xf32>
    %41 = arith.mulf %37, %40 : vector<4x1024xf32>
    %42 = arith.truncf %41 : vector<4x1024xf32> to vector<4x1024xbf16>
    %c1023_i32 = arith.constant 1023 : i32
    %43 = tpu.dynamic_rotate %18 by %c1023_i32 dim 1 : vector<4x1024xf32>, i32 -> vector<4x1024xf32>
    %c5 = arith.constant 5 : index
    %c0_32 = arith.constant 0 : index
    %c0_33 = arith.constant 0 : index
    %44 = vector.load %arg7[%c5, %c0_32, %c0_33] : memref<9x1x1024xf32, #tpu.memory_space<vmem>>, vector<1x1x1024xf32>
    %45 = vector.shape_cast %44 : vector<1x1x1024xf32> to vector<1x1024xf32>
    %46 = vector.broadcast %45 : vector<1x1024xf32> to vector<4x1024xf32>
    %47 = arith.mulf %43, %46 : vector<4x1024xf32>
    %48 = arith.truncf %47 : vector<4x1024xf32> to vector<4x1024xbf16>
    %c1009_i32 = arith.constant 1009 : i32
    %49 = tpu.dynamic_rotate %18 by %c1009_i32 dim 1 : vector<4x1024xf32>, i32 -> vector<4x1024xf32>
    %c6 = arith.constant 6 : index
    %c0_34 = arith.constant 0 : index
    %c0_35 = arith.constant 0 : index
    %50 = vector.load %arg7[%c6, %c0_34, %c0_35] : memref<9x1x1024xf32, #tpu.memory_space<vmem>>, vector<1x1x1024xf32>
    %51 = vector.shape_cast %50 : vector<1x1x1024xf32> to vector<1x1024xf32>
    %52 = vector.broadcast %51 : vector<1x1024xf32> to vector<4x1024xf32>
    %53 = arith.mulf %49, %52 : vector<4x1024xf32>
    %54 = arith.truncf %53 : vector<4x1024xf32> to vector<4x1024xbf16>
    %c1008_i32 = arith.constant 1008 : i32
    %55 = tpu.dynamic_rotate %18 by %c1008_i32 dim 1 : vector<4x1024xf32>, i32 -> vector<4x1024xf32>
    %c7 = arith.constant 7 : index
    %c0_36 = arith.constant 0 : index
    %c0_37 = arith.constant 0 : index
    %56 = vector.load %arg7[%c7, %c0_36, %c0_37] : memref<9x1x1024xf32, #tpu.memory_space<vmem>>, vector<1x1x1024xf32>
    %57 = vector.shape_cast %56 : vector<1x1x1024xf32> to vector<1x1024xf32>
    %58 = vector.broadcast %57 : vector<1x1024xf32> to vector<4x1024xf32>
    %59 = arith.mulf %55, %58 : vector<4x1024xf32>
    %60 = arith.truncf %59 : vector<4x1024xf32> to vector<4x1024xbf16>
    %c1007_i32 = arith.constant 1007 : i32
    %61 = tpu.dynamic_rotate %18 by %c1007_i32 dim 1 : vector<4x1024xf32>, i32 -> vector<4x1024xf32>
    %c8 = arith.constant 8 : index
    %c0_38 = arith.constant 0 : index
    %c0_39 = arith.constant 0 : index
    %62 = vector.load %arg7[%c8, %c0_38, %c0_39] : memref<9x1x1024xf32, #tpu.memory_space<vmem>>, vector<1x1x1024xf32>
    %63 = vector.shape_cast %62 : vector<1x1x1024xf32> to vector<1x1024xf32>
    %64 = vector.broadcast %63 : vector<1x1024xf32> to vector<4x1024xf32>
    %65 = arith.mulf %61, %64 : vector<4x1024xf32>
    %66 = arith.truncf %65 : vector<4x1024xf32> to vector<4x1024xbf16>
    %67 = tpu.concatenate %24, %30, %36, %42, %8, %48, %54, %60, %66 in 0 : vector<4x1024xbf16>, vector<4x1024xbf16>, vector<4x1024xbf16>, vector<4x1024xbf16>, vector<4x1024xbf16>, vector<4x1024xbf16>, vector<4x1024xbf16>, vector<4x1024xbf16>, vector<4x1024xbf16> -> vector<36x1024xbf16>
    %c0_40 = arith.constant 0 : index
    %c0_41 = arith.constant 0 : index
    %68 = vector.load %arg3[%c0_40, %c0_41] : memref<8x36xbf16, #tpu.memory_space<vmem>>, vector<8x36xbf16>
    %cst = arith.constant dense<0.000000e+00> : vector<8x1024xf32>
    %69 = tpu.matmul %68, %67, %cst {dimension_numbers = #tpu.dot_dimension_numbers<[1], [0], [0], [1], [0, 0, 1, 1], [], []>} : vector<8x36xbf16>, vector<36x1024xbf16>, vector<8x1024xf32> -> vector<8x1024xf32>
    %c0_42 = arith.constant 0 : index
    %c0_43 = arith.constant 0 : index
    %70 = vector.load %arg4[%c0_42, %c0_43] : memref<8x1xf32, #tpu.memory_space<vmem>>, vector<8x1xf32>
    %71 = vector.broadcast %70 : vector<8x1xf32> to vector<8x1024xf32>
    %72 = arith.addf %69, %71 : vector<8x1024xf32>
    %cst_44 = arith.constant 0.000000e+00 : f32
    %73 = vector.broadcast %cst_44 : f32 to vector<8x1024xf32>
    %74 = arith.maximumf %72, %73 : vector<8x1024xf32>
    %75 = arith.truncf %74 : vector<8x1024xf32> to vector<8x1024xbf16>
    %76 = tpu.concatenate %75, %17 in 0 : vector<8x1024xbf16>, vector<4x1024xbf16> -> vector<12x1024xbf16>
    %c0_45 = arith.constant 0 : index
    %c0_46 = arith.constant 0 : index
    %77 = vector.load %arg5[%c0_45, %c0_46] : memref<8x12xbf16, #tpu.memory_space<vmem>>, vector<8x12xbf16>
    %cst_47 = arith.constant dense<0.000000e+00> : vector<8x1024xf32>
    %78 = tpu.matmul %77, %76, %cst_47 {dimension_numbers = #tpu.dot_dimension_numbers<[1], [0], [0], [1], [0, 0, 1, 1], [], []>} : vector<8x12xbf16>, vector<12x1024xbf16>, vector<8x1024xf32> -> vector<8x1024xf32>
    %c0_48 = arith.constant 0 : index
    %c0_49 = arith.constant 0 : index
    %79 = vector.load %arg6[%c0_48, %c0_49] : memref<8x1xf32, #tpu.memory_space<vmem>>, vector<8x1xf32>
    %80 = vector.broadcast %79 : vector<8x1xf32> to vector<8x1024xf32>
    %81 = arith.addf %78, %80 : vector<8x1024xf32>
    %82 = vector.extract_strided_slice %81 {offsets = [0, 0], sizes = [8, 256], strides = [1, 1]} : vector<8x1024xf32> to vector<8x256xf32>
    %83 = arith.truncf %82 : vector<8x256xf32> to vector<8x256xbf16>
    %c0_50 = arith.constant 0 : index
    %c0_51 = arith.constant 0 : index
    %c0_52 = arith.constant 0 : index
    %84 = vector.load %arg8[%c0_50, %c0_51, %c0_52] : memref<4x8x256xbf16, #tpu.memory_space<vmem>>, vector<1x8x256xbf16>
    %85 = vector.shape_cast %84 : vector<1x8x256xbf16> to vector<8x256xbf16>
    %86 = vector.shape_cast %83 : vector<8x256xbf16> to vector<1x8x256xbf16>
    tpu.vector_store %arg8[%c0_50, %c0_51, %c0_52], %86 {strides = array<i32>} : memref<4x8x256xbf16, #tpu.memory_space<vmem>>, vector<1x8x256xbf16>,
    %87 = vector.extract_strided_slice %81 {offsets = [0, 256], sizes = [8, 256], strides = [1, 1]} : vector<8x1024xf32> to vector<8x256xf32>
    %88 = arith.truncf %87 : vector<8x256xf32> to vector<8x256xbf16>
    %c1_53 = arith.constant 1 : index
    %c0_54 = arith.constant 0 : index
    %c0_55 = arith.constant 0 : index
    %89 = vector.load %arg8[%c1_53, %c0_54, %c0_55] : memref<4x8x256xbf16, #tpu.memory_space<vmem>>, vector<1x8x256xbf16>
    %90 = vector.shape_cast %89 : vector<1x8x256xbf16> to vector<8x256xbf16>
    %91 = vector.shape_cast %88 : vector<8x256xbf16> to vector<1x8x256xbf16>
    tpu.vector_store %arg8[%c1_53, %c0_54, %c0_55], %91 {strides = array<i32>} : memref<4x8x256xbf16, #tpu.memory_space<vmem>>, vector<1x8x256xbf16>,
    %92 = vector.extract_strided_slice %81 {offsets = [0, 512], sizes = [8, 256], strides = [1, 1]} : vector<8x1024xf32> to vector<8x256xf32>
    %93 = arith.truncf %92 : vector<8x256xf32> to vector<8x256xbf16>
    %c2_56 = arith.constant 2 : index
    %c0_57 = arith.constant 0 : index
    %c0_58 = arith.constant 0 : index
    %94 = vector.load %arg8[%c2_56, %c0_57, %c0_58] : memref<4x8x256xbf16, #tpu.memory_space<vmem>>, vector<1x8x256xbf16>
    %95 = vector.shape_cast %94 : vector<1x8x256xbf16> to vector<8x256xbf16>
    %96 = vector.shape_cast %93 : vector<8x256xbf16> to vector<1x8x256xbf16>
    tpu.vector_store %arg8[%c2_56, %c0_57, %c0_58], %96 {strides = array<i32>} : memref<4x8x256xbf16, #tpu.memory_space<vmem>>, vector<1x8x256xbf16>,
    %97 = vector.extract_strided_slice %81 {offsets = [0, 768], sizes = [8, 256], strides = [1, 1]} : vector<8x1024xf32> to vector<8x256xf32>
    %98 = arith.truncf %97 : vector<8x256xf32> to vector<8x256xbf16>
    %c3_59 = arith.constant 3 : index
    %c0_60 = arith.constant 0 : index
    %c0_61 = arith.constant 0 : index
    %99 = vector.load %arg8[%c3_59, %c0_60, %c0_61] : memref<4x8x256xbf16, #tpu.memory_space<vmem>>, vector<1x8x256xbf16>
    %100 = vector.shape_cast %99 : vector<1x8x256xbf16> to vector<8x256xbf16>
    %101 = vector.shape_cast %98 : vector<8x256xbf16> to vector<1x8x256xbf16>
    tpu.vector_store %arg8[%c3_59, %c0_60, %c0_61], %101 {strides = array<i32>} : memref<4x8x256xbf16, #tpu.memory_space<vmem>>, vector<1x8x256xbf16>,
    return
  }
  func.func @transform_0(%arg0: i32) -> (i32, i32, i32) {
    %c0_i32 = arith.constant 0 : i32
    %c0_i32_0 = arith.constant 0 : i32
    %c0_i32_1 = arith.constant 0 : i32
    return %arg0, %c0_i32, %c0_i32_0 : i32, i32, i32
  }
  func.func @transform_1(%arg0: i32) -> (i32, i32, i32) {
    %c0_i32 = arith.constant 0 : i32
    %c0_i32_0 = arith.constant 0 : i32
    %c0_i32_1 = arith.constant 0 : i32
    return %arg0, %c0_i32, %c0_i32_0 : i32, i32, i32
  }
  func.func @transform_2(%arg0: i32) -> (i32, i32) {
    %c0_i32 = arith.constant 0 : i32
    %c0_i32_0 = arith.constant 0 : i32
    %c0_i32_1 = arith.constant 0 : i32
    return %c0_i32, %c0_i32_0 : i32, i32
  }
  func.func @transform_3(%arg0: i32) -> (i32, i32) {
    %c0_i32 = arith.constant 0 : i32
    %c0_i32_0 = arith.constant 0 : i32
    %c0_i32_1 = arith.constant 0 : i32
    return %c0_i32, %c0_i32_0 : i32, i32
  }
  func.func @transform_4(%arg0: i32) -> (i32, i32) {
    %c0_i32 = arith.constant 0 : i32
    %c0_i32_0 = arith.constant 0 : i32
    %c0_i32_1 = arith.constant 0 : i32
    return %c0_i32, %c0_i32_0 : i32, i32
  }
  func.func @transform_5(%arg0: i32) -> (i32, i32) {
    %c0_i32 = arith.constant 0 : i32
    %c0_i32_0 = arith.constant 0 : i32
    %c0_i32_1 = arith.constant 0 : i32
    return %c0_i32, %c0_i32_0 : i32, i32
  }
  func.func @transform_6(%arg0: i32) -> (i32, i32, i32) {
    %c0_i32 = arith.constant 0 : i32
    %c0_i32_0 = arith.constant 0 : i32
    %c0_i32_1 = arith.constant 0 : i32
    %c0_i32_2 = arith.constant 0 : i32
    return %c0_i32, %c0_i32_0, %c0_i32_1 : i32, i32, i32
  }
  func.func @transform_7(%arg0: i32) -> (i32, i32, i32) {
    %c0_i32 = arith.constant 0 : i32
    %c0_i32_0 = arith.constant 0 : i32
    %c0_i32_1 = arith.constant 0 : i32
    return %arg0, %c0_i32, %c0_i32_0 : i32, i32, i32
  }
}

</mosaic_0001>

<llo_original>
// kernel: merge_module_forward.1
$region0: #{merge_module_forward.1}
  #allocation0 [shape = 'u32[]', space=smem, size = 0x4, offset = 0x4, fixed_abs, tag = 'smem constant byte address 0x4 - core index']
  #allocation1 [shape = 'u32[72,128]{1,0:T(1,128)}', space=vmem, size = 0x9000, scoped, tag = 'internal scratch']
  %s0 = inlined_call_operand.vmem [shape: bf16[8,4,256], index: 0, kind: input, shape index: {}]
  %s1 = inlined_call_operand.vmem [shape: bf16[8,4,256], index: 1, kind: input, shape index: {}]
  %s2 = inlined_call_operand.vmem [shape: bf16[8,36], index: 2, kind: input, shape index: {}]
  %s3 = inlined_call_operand.vmem [shape: f32[8,1], index: 3, kind: input, shape index: {}]
  %s4 = inlined_call_operand.vmem [shape: bf16[8,12], index: 4, kind: input, shape index: {}]
  %s5 = inlined_call_operand.vmem [shape: f32[8,1], index: 5, kind: input, shape index: {}]
  %s6 = inlined_call_operand.vmem [shape: f32[9,1,1024], index: 6, kind: input, shape index: {}]
  %s7 = inlined_call_operand.vmem [shape: bf16[8,8,256], index: 7, kind: output, shape index: {}]
  %s8 = sld [smem:[#allocation0]]
  $region61: #{merge_module_forward.1} parent=0
    _
  %s10 = ssub.s32 1, %s8
  %s11 = scalar_select 0, %s10, %s8
  loop: start=0, step=1, limit=4
  $region2: #{merge_module_forward.1} parent=0 // loop_pre_header
    _
  $region3: #{merge_module_forward.1} parent=0 // loop_header
    %s13 = sphi 0, %s17
    %p14 = scmp.ge.s32.totalorder %s13, 4
    %s23 = sphi 0, %s25
    %s26 = sphi 0, %s23
    %s27 = sphi 0, %s26
    %s43 = sphi 0, %s27
    %s49 = sphi 0, %s51
    %s52 = sphi 0, %s49
    %s53 = sphi 0, %s52
    %s69 = sphi 0, %s53
    %s73 = sphi 0, %s73
    %s75 = sphi 0, %s73
    %s76 = sphi 0, %s75
    %s90 = sphi 0, %s76
    %s94 = sphi 0, %s94
    %s96 = sphi 0, %s94
    %s97 = sphi 0, %s96
    %s111 = sphi 0, %s97
    %s115 = sphi 0, %s115
    %s117 = sphi 0, %s115
    %s118 = sphi 0, %s117
    %s132 = sphi 0, %s118
    %s136 = sphi 0, %s136
    %s138 = sphi 0, %s136
    %s139 = sphi 0, %s138
    %s153 = sphi 0, %s139
    %s157 = sphi 0, %s157
    %s159 = sphi 0, %s157
    %s160 = sphi 0, %s159
    %s174 = sphi 0, %s160
    %s180 = sphi 0, %s182
    %s183 = sphi 0, %s180
    %s184 = sphi 0, %s183
    %s200 = sphi 0, %s184
  $region4: #{merge_module_forward.1} parent=0 // loop_header_branch
    %16 = sbr.rel (%p14) target = $region8
  $region5: #{merge_module_forward.1} parent=0 // loop_body
    %s18 = ssub.s32 %s13, 1
    %s19 = ssub.s32 %s13, 2
    %s20 = sadd.s32 %s13, 1
    %s21 = ssub.s32 %s13, %s20
    %p22 = scmp.eq.s32.totalorder %s21, 0
    %s24 = sadd.s32 %s23, 1
    %s25 = scalar_select %p22, %s23, %s24
    %p28 = pneg %p22
    %p29 = scmp.eq.s32.totalorder %s13, 1
    %p30 = por %p28, %p29
    %p31 = scmp.ne.s32.totalorder %s23, %s26
    %p32 = scmp.eq.s32.totalorder %s13, 0
    %p33 = por %p31, %p32
    %p34 = scmp.ne.s32.totalorder %s23, %s26
    %p35 = scmp.eq.s32.totalorder %s18, 1
    %p36 = por %p34, %p35
    %p37 = scmp.ne.s32.totalorder %s26, %s27
    %p38 = scmp.eq.s32.totalorder %s18, 0
    %p39 = por %p37, %p38
    %p40 = scmp.ne.s32.totalorder %s26, %s27
    %p41 = scmp.eq.s32.totalorder %s19, 1
    %p42 = por %p40, %p41
    %p44 = scmp.ne.s32.totalorder %s27, %s43
    %p45 = scmp.eq.s32.totalorder %s19, 0
    %p46 = por %p44, %p45
    %s47 = ssub.s32 %s13, %s20
    %p48 = scmp.eq.s32.totalorder %s47, 0
    %s50 = sadd.s32 %s49, 1
    %s51 = scalar_select %p48, %s49, %s50
    %p54 = pneg %p48
    %p55 = scmp.eq.s32.totalorder %s13, 1
    %p56 = por %p54, %p55
    %p57 = scmp.ne.s32.totalorder %s49, %s52
    %p58 = scmp.eq.s32.totalorder %s13, 0
    %p59 = por %p57, %p58
    %p60 = scmp.ne.s32.totalorder %s49, %s52
    %p61 = scmp.eq.s32.totalorder %s18, 1
    %p62 = por %p60, %p61
    %p63 = scmp.ne.s32.totalorder %s52, %s53
    %p64 = scmp.eq.s32.totalorder %s18, 0
    %p65 = por %p63, %p64
    %p66 = scmp.ne.s32.totalorder %s52, %s53
    %p67 = scmp.eq.s32.totalorder %s19, 1
    %p68 = por %p66, %p67
    %p70 = scmp.ne.s32.totalorder %s53, %s69
    %p71 = scmp.eq.s32.totalorder %s19, 0
    %p72 = por %p70, %p71
    %s74 = sadd.s32 %s73, 1
    %p77 = scmp.eq.s32.totalorder %s13, 1
    %p78 = scmp.ne.s32.totalorder %s73, %s75
    %p79 = scmp.eq.s32.totalorder %s13, 0
    %p80 = por %p78, %p79
    %p81 = scmp.ne.s32.totalorder %s73, %s75
    %p82 = scmp.eq.s32.totalorder %s18, 1
    %p83 = por %p81, %p82
    %p84 = scmp.ne.s32.totalorder %s75, %s76
    %p85 = scmp.eq.s32.totalorder %s18, 0
    %p86 = por %p84, %p85
    %p87 = scmp.ne.s32.totalorder %s75, %s76
    %p88 = scmp.eq.s32.totalorder %s19, 1
    %p89 = por %p87, %p88
    %p91 = scmp.ne.s32.totalorder %s76, %s90
    %p92 = scmp.eq.s32.totalorder %s19, 0
    %p93 = por %p91, %p92
    %s95 = sadd.s32 %s94, 1
    %p98 = scmp.eq.s32.totalorder %s13, 1
    %p99 = scmp.ne.s32.totalorder %s94, %s96
    %p100 = scmp.eq.s32.totalorder %s13, 0
    %p101 = por %p99, %p100
    %p102 = scmp.ne.s32.totalorder %s94, %s96
    %p103 = scmp.eq.s32.totalorder %s18, 1
    %p104 = por %p102, %p103
    %p105 = scmp.ne.s32.totalorder %s96, %s97
    %p106 = scmp.eq.s32.totalorder %s18, 0
    %p107 = por %p105, %p106
    %p108 = scmp.ne.s32.totalorder %s96, %s97
    %p109 = scmp.eq.s32.totalorder %s19, 1
    %p110 = por %p108, %p109
    %p112 = scmp.ne.s32.totalorder %s97, %s111
    %p113 = scmp.eq.s32.totalorder %s19, 0
    %p114 = por %p112, %p113
    %s116 = sadd.s32 %s115, 1
    %p119 = scmp.eq.s32.totalorder %s13, 1
    %p120 = scmp.ne.s32.totalorder %s115, %s117
    %p121 = scmp.eq.s32.totalorder %s13, 0
    %p122 = por %p120, %p121
    %p123 = scmp.ne.s32.totalorder %s115, %s117
    %p124 = scmp.eq.s32.totalorder %s18, 1
    %p125 = por %p123, %p124
    %p126 = scmp.ne.s32.totalorder %s117, %s118
    %p127 = scmp.eq.s32.totalorder %s18, 0
    %p128 = por %p126, %p127
    %p129 = scmp.ne.s32.totalorder %s117, %s118
    %p130 = scmp.eq.s32.totalorder %s19, 1
    %p131 = por %p129, %p130
    %p133 = scmp.ne.s32.totalorder %s118, %s132
    %p134 = scmp.eq.s32.totalorder %s19, 0
    %p135 = por %p133, %p134
    %s137 = sadd.s32 %s136, 1
    %p140 = scmp.eq.s32.totalorder %s13, 1
    %p141 = scmp.ne.s32.totalorder %s136, %s138
    %p142 = scmp.eq.s32.totalorder %s13, 0
    %p143 = por %p141, %p142
    %p144 = scmp.ne.s32.totalorder %s136, %s138
    %p145 = scmp.eq.s32.totalorder %s18, 1
    %p146 = por %p144, %p145
    %p147 = scmp.ne.s32.totalorder %s138, %s139
    %p148 = scmp.eq.s32.totalorder %s18, 0
    %p149 = por %p147, %p148
    %p150 = scmp.ne.s32.totalorder %s138, %s139
    %p151 = scmp.eq.s32.totalorder %s19, 1
    %p152 = por %p150, %p151
    %p154 = scmp.ne.s32.totalorder %s139, %s153
    %p155 = scmp.eq.s32.totalorder %s19, 0
    %p156 = por %p154, %p155
    %s158 = sadd.s32 %s157, 1
    %p161 = scmp.eq.s32.totalorder %s13, 1
    %p162 = scmp.ne.s32.totalorder %s157, %s159
    %p163 = scmp.eq.s32.totalorder %s13, 0
    %p164 = por %p162, %p163
    %p165 = scmp.ne.s32.totalorder %s157, %s159
    %p166 = scmp.eq.s32.totalorder %s18, 1
    %p167 = por %p165, %p166
    %p168 = scmp.ne.s32.totalorder %s159, %s160
    %p169 = scmp.eq.s32.totalorder %s18, 0
    %p170 = por %p168, %p169
    %p171 = scmp.ne.s32.totalorder %s159, %s160
    %p172 = scmp.eq.s32.totalorder %s19, 1
    %p173 = por %p171, %p172
    %p175 = scmp.ne.s32.totalorder %s160, %s174
    %p176 = scmp.eq.s32.totalorder %s19, 0
    %p177 = por %p175, %p176
    %s178 = ssub.s32 %s13, %s20
    %p179 = scmp.eq.s32.totalorder %s178, 0
    %s181 = sadd.s32 %s180, 1
    %s182 = scalar_select %p179, %s180, %s181
    %p185 = pneg %p179
    %p186 = scmp.eq.s32.totalorder %s13, 1
    %p187 = por %p185, %p186
    %p188 = scmp.ne.s32.totalorder %s180, %s183
    %p189 = scmp.eq.s32.totalorder %s13, 0
    %p190 = por %p188, %p189
    %p191 = scmp.ne.s32.totalorder %s180, %s183
    %p192 = scmp.eq.s32.totalorder %s18, 1
    %p193 = por %p191, %p192
    %p194 = scmp.ne.s32.totalorder %s183, %s184
    %p195 = scmp.eq.s32.totalorder %s18, 0
    %p196 = por %p194, %p195
    %p197 = scmp.ne.s32.totalorder %s183, %s184
    %p198 = scmp.eq.s32.totalorder %s19, 1
    %p199 = por %p197, %p198
    %p201 = scmp.ne.s32.totalorder %s184, %s200
    %p202 = scmp.eq.s32.totalorder %s19, 0
    %p203 = por %p201, %p202
    %p204 = scmp.le.s32.totalorder 1, %s13
    %p205 = scmp.lt.s32.totalorder %s13, 3
    %p206 = pnand %p204, %p205
    %p207 = pneg %p206
    // Predicated region
    $region9: #{merge_module_forward.1} parent=5 // pred_check
      _
    $region10: #{merge_module_forward.1} parent=5 // pred_check_branch
      %209 = sbr.rel (%p206) target = $region12
    $region11: #{merge_module_forward.1} parent=5 // pred_region
      %s210 = ssub.s32 %s13, 1
      // Predicated region
      $region13: #{merge_module_forward.1} parent=11 // pred_check
        %p211 = pneg %p86
      $region14: #{merge_module_forward.1} parent=11 // pred_check_branch
        %213 = sbr.rel (%p211) target = $region16
      $region15: #{merge_module_forward.1} parent=11 // pred_region
        _
      $region16: #{merge_module_forward.1} parent=11 // pred_fallthru
        _
      // Predicated region
      $region17: #{merge_module_forward.1} parent=11 // pred_check
        %p214 = pneg %p107
      $region18: #{merge_module_forward.1} parent=11 // pred_check_branch
        %216 = sbr.rel (%p214) target = $region20
      $region19: #{merge_module_forward.1} parent=11 // pred_region
        _
      $region20: #{merge_module_forward.1} parent=11 // pred_fallthru
        _
      // Predicated region
      $region21: #{merge_module_forward.1} parent=11 // pred_check
        %p217 = pneg %p128
      $region22: #{merge_module_forward.1} parent=11 // pred_check_branch
        %219 = sbr.rel (%p217) target = $region24
      $region23: #{merge_module_forward.1} parent=11 // pred_region
        _
      $region24: #{merge_module_forward.1} parent=11 // pred_fallthru
        _
      // Predicated region
      $region25: #{merge_module_forward.1} parent=11 // pred_check
        %p220 = pneg %p149
      $region26: #{merge_module_forward.1} parent=11 // pred_check_branch
        %222 = sbr.rel (%p220) target = $region28
      $region27: #{merge_module_forward.1} parent=11 // pred_region
        _
      $region28: #{merge_module_forward.1} parent=11 // pred_fallthru
        _
      // Predicated region
      $region29: #{merge_module_forward.1} parent=11 // pred_check
        %p223 = pneg %p170
      $region30: #{merge_module_forward.1} parent=11 // pred_check_branch
        %225 = sbr.rel (%p223) target = $region32
      $region31: #{merge_module_forward.1} parent=11 // pred_region
        _
      $region32: #{merge_module_forward.1} parent=11 // pred_fallthru
        _
    $region12: #{merge_module_forward.1} parent=5 // pred_fallthru
      _
    %p226 = scmp.lt.s32.totalorder %s13, 2
    // Predicated region
    $region33: #{merge_module_forward.1} parent=5 // pred_check
      %p227 = pneg %p226
    $region34: #{merge_module_forward.1} parent=5 // pred_check_branch
      %229 = sbr.rel (%p227) target = $region36
    $region35: #{merge_module_forward.1} parent=5 // pred_region
      // Predicated region
      $region37: #{merge_module_forward.1} parent=35 // pred_check
        %p230 = pneg %p33
      $region38: #{merge_module_forward.1} parent=35 // pred_check_branch
        %232 = sbr.rel (%p230) target = $region40
      $region39: #{merge_module_forward.1} parent=35 // pred_region
        %s233 = smul.u32 4, %s13
        %p234 = scmp.lt.s32.totalorder %s233, 7
        %s235 = scalar_select %p234, %s233, 7
        %s236 = smul.addr %s235, 2
        %s237 = smul.addr %s236, 2
        %s238 = scalar_lea.vmem %s0, %s237
        %s239 = smul.u32 4, %s13
      $region40: #{merge_module_forward.1} parent=35 // pred_fallthru
        _
      // Predicated region
      $region41: #{merge_module_forward.1} parent=35 // pred_check
        %p240 = pneg %p59
      $region42: #{merge_module_forward.1} parent=35 // pred_check_branch
        %242 = sbr.rel (%p240) target = $region44
      $region43: #{merge_module_forward.1} parent=35 // pred_region
        %s243 = smul.u32 4, %s13
        %p244 = scmp.lt.s32.totalorder %s243, 7
        %s245 = scalar_select %p244, %s243, 7
        %s246 = smul.addr %s245, 2
        %s247 = smul.addr %s246, 2
        %s248 = scalar_lea.vmem %s1, %s247
        %s249 = smul.u32 4, %s13
      $region44: #{merge_module_forward.1} parent=35 // pred_fallthru
        _
    $region36: #{merge_module_forward.1} parent=5 // pred_fallthru
      _
    %p250 = scmp.le.s32.totalorder 1, %s13
    %p251 = scmp.lt.s32.totalorder %s13, 3
    %p252 = pnand %p250, %p251
    %p253 = pneg %p252
    // Predicated region
    $region45: #{merge_module_forward.1} parent=5 // pred_check
      _
    $region46: #{merge_module_forward.1} parent=5 // pred_check_branch
      %255 = sbr.rel (%p252) target = $region48
    $region47: #{merge_module_forward.1} parent=5 // pred_region
      %s256 = ssub.s32 %s13, 1
      %s257 = smul.u32 4, %s18
      %p258 = scmp.lt.s32.totalorder %s257, 7
      %s259 = scalar_select %p258, %s257, 7
      %s260 = smul.addr %s259, 2
      %s261 = smul.addr %s260, 2
      %s262 = scalar_lea.vmem %s0, %s261
      %p263 = pneg %p39
      %p264 = pneg %p36
      %s265 = smul.u32 4, %s18
      %p266 = scmp.lt.s32.totalorder %s265, 7
      %s267 = scalar_select %p266, %s265, 7
      %s268 = smul.addr %s267, 2
      %s269 = smul.addr %s268, 2
      %s270 = scalar_lea.vmem %s1, %s269
      %p271 = pneg %p65
      %p272 = pneg %p62
      %p273 = pneg %p86
      %p274 = pneg %p83
      %p275 = pneg %p107
      %p276 = pneg %p104
      %p277 = pneg %p128
      %p278 = pneg %p125
      %p279 = pneg %p149
      %p280 = pneg %p146
      %p281 = pneg %p170
      %p282 = pneg %p167
      %p283 = pneg %p196
      %p284 = pneg %p193
      %s285 = smul.u32 4, %s18
      %p286 = scmp.lt.s32.totalorder %s285, 7
      %s287 = scalar_select %p286, %s285, 7
      %s288 = smul.addr %s287, 2
      %s289 = smul.addr %s288, 4
      %s290 = scalar_lea.vmem %s7, %s289
      %s291 = smul.u32 4, %s18
      %p292 = scmp.lt.s32.totalorder %s291, 7
      %s293 = scalar_select %p292, %s291, 7
      %s294 = smul.addr %s293, 2
      %s295 = smul.addr %s294, 2
      %s296 = scalar_lea.vmem %s0, %s295
      %s297 = smul.u32 4, %s18
      %s298 = smul.u32 4, %s18
      %p299 = scmp.lt.s32.totalorder %s298, 7
      %s300 = scalar_select %p299, %s298, 7
      %s301 = smul.addr %s300, 2
      %s302 = smul.addr %s301, 2
      %s303 = scalar_lea.vmem %s1, %s302
      %s304 = smul.u32 4, %s18
      %s305 = smul.u32 4, %s18
      %p306 = scmp.lt.s32.totalorder %s305, 7
      %s307 = scalar_select %p306, %s305, 7
      %s308 = smul.addr %s307, 2
      %s309 = smul.addr %s308, 4
      %s310 = scalar_lea.vmem %s7, %s309
      %s311 = smul.u32 4, %s18
      %v313 = vld [vmem:[%s296] sm:$0xf]
      %s314 = scalar_lea.vmem %s296, 4
      %v315 = vld [vmem:[%s314] sm:$0xf]
      %s316 = scalar_lea.vmem %s296, 8
      %v317 = vld [vmem:[%s316] sm:$0xf]
      %s318 = scalar_lea.vmem %s296, 12
      %v319 = vld [vmem:[%s318] sm:$0xf]
      %321 = vst [vmem:[#allocation1] ss:$4 sm:$0xff] %v313
      %v322 = vld.sshfl [vmem:[#allocation1] sm:$0xff pattern:$0x73625140]
      %v323 = vld.sshfl [vmem:[#allocation1 + $0x8] sm:$0xff pattern:$0x73625140]
      %327 = vst [vmem:[#allocation1] ss:$4 sm:$0xff] %v315
      %v328 = vld.sshfl [vmem:[#allocation1] sm:$0xff pattern:$0x73625140]
      %v329 = vld.sshfl [vmem:[#allocation1 + $0x8] sm:$0xff pattern:$0x73625140]
      %333 = vst [vmem:[#allocation1] ss:$4 sm:$0xff] %v317
      %v334 = vld.sshfl [vmem:[#allocation1] sm:$0xff pattern:$0x73625140]
      %v335 = vld.sshfl [vmem:[#allocation1 + $0x8] sm:$0xff pattern:$0x73625140]
      %339 = vst [vmem:[#allocation1] ss:$4 sm:$0xff] %v319
      %v340 = vld.sshfl [vmem:[#allocation1] sm:$0xff pattern:$0x73625140]
      %v341 = vld.sshfl [vmem:[#allocation1 + $0x8] sm:$0xff pattern:$0x73625140]
      %v344 = vld [vmem:[%s303] sm:$0xf]
      %s345 = scalar_lea.vmem %s303, 4
      %v346 = vld [vmem:[%s345] sm:$0xf]
      %s347 = scalar_lea.vmem %s303, 8
      %v348 = vld [vmem:[%s347] sm:$0xf]
      %s349 = scalar_lea.vmem %s303, 12
      %v350 = vld [vmem:[%s349] sm:$0xf]
      %352 = vst [vmem:[#allocation1] ss:$4 sm:$0xff] %v344
      %v353 = vld.sshfl [vmem:[#allocation1] sm:$0xff pattern:$0x73625140]
      %v355 = vld.sshfl [vmem:[#allocation1 + $0x8] sm:$0xff pattern:$0x73625140]
      %358 = vst [vmem:[#allocation1] ss:$4 sm:$0xff] %v346
      %v359 = vld.sshfl [vmem:[#allocation1] sm:$0xff pattern:$0x73625140]
      %v361 = vld.sshfl [vmem:[#allocation1 + $0x8] sm:$0xff pattern:$0x73625140]
      %364 = vst [vmem:[#allocation1] ss:$4 sm:$0xff] %v348
      %v365 = vld.sshfl [vmem:[#allocation1] sm:$0xff pattern:$0x73625140]
      %v367 = vld.sshfl [vmem:[#allocation1 + $0x8] sm:$0xff pattern:$0x73625140]
      %370 = vst [vmem:[#allocation1] ss:$4 sm:$0xff] %v350
      %v371 = vld.sshfl [vmem:[#allocation1] sm:$0xff pattern:$0x73625140]
      %v373 = vld.sshfl [vmem:[#allocation1 + $0x8] sm:$0xff pattern:$0x73625140]
      %v375 = vunpack.c.l.bf16 %v322
      %v376 = vunpack.c.l.bf16 %v323
      %v377 = vunpack.c.l.bf16 %v328
      %v378 = vunpack.c.l.bf16 %v329
      %v379 = vunpack.c.l.bf16 %v334
      %v380 = vunpack.c.l.bf16 %v335
      %v381 = vunpack.c.l.bf16 %v340
      %v382 = vunpack.c.l.bf16 %v341
      %383 = vrot.lane.b32.xlu0 %v375, 17
      %v384 = vpop.permute.xlu0 %383
      %385 = vrot.lane.b32.xlu0 %v376, 17
      %v386 = vpop.permute.xlu0 %385
      %387 = vrot.lane.b32.xlu0 %v377, 17
      %v388 = vpop.permute.xlu0 %387
      %389 = vrot.lane.b32.xlu0 %v378, 17
      %v390 = vpop.permute.xlu0 %389
      %391 = vrot.lane.b32.xlu0 %v379, 17
      %v392 = vpop.permute.xlu0 %391
      %393 = vrot.lane.b32.xlu0 %v380, 17
      %v394 = vpop.permute.xlu0 %393
      %395 = vrot.lane.b32.xlu0 %v381, 17
      %v396 = vpop.permute.xlu0 %395
      %397 = vrot.lane.b32.xlu0 %v382, 17
      %v398 = vpop.permute.xlu0 %397
      %v399 = vlaneseq
      %v400 = vand.u32 %v399, 127
      %vm401 = vcmp.lt.s32.totalorder %v400, 17
      %v402 = vsel %vm401, %v396, %v398
      %v403 = vsel %vm401, %v394, %v396
      %v404 = vsel %vm401, %v392, %v394
      %v405 = vsel %vm401, %v390, %v392
      %v406 = vsel %vm401, %v388, %v390
      %v407 = vsel %vm401, %v386, %v388
      %v408 = vsel %vm401, %v384, %v386
      %v409 = vsel %vm401, %v398, %v384
      %v410 = vld [vmem:[%s6] sm:$0xff]
      %v412 = vperm.slane %v410, 0
      %v413 = vperm.slane %v410, 1
      %v414 = vperm.slane %v410, 2
      %v415 = vperm.slane %v410, 3
      %v416 = vperm.slane %v410, 4
      %v417 = vperm.slane %v410, 5
      %v418 = vperm.slane %v410, 6
      %v419 = vperm.slane %v410, 7
      %v428 = vmul.f32 %v409, %v412
      %v429 = vmul.f32 %v408, %v413
      %v430 = vmul.f32 %v407, %v414
      %v431 = vmul.f32 %v406, %v415
      %v432 = vmul.f32 %v405, %v416
      %v433 = vmul.f32 %v404, %v417
      %v434 = vmul.f32 %v403, %v418
      %v435 = vmul.f32 %v402, %v419
      %v436 = vpack.c.bf16 %v429, %v428
      %v437 = vpack.c.bf16 %v431, %v430
      %v438 = vpack.c.bf16 %v433, %v432
      %v439 = vpack.c.bf16 %v435, %v434
      %440 = vrot.lane.b32.xlu0 %v375, 16
      %v441 = vpop.permute.xlu0 %440
      %442 = vrot.lane.b32.xlu0 %v376, 16
      %v443 = vpop.permute.xlu0 %442
      %444 = vrot.lane.b32.xlu0 %v377, 16
      %v445 = vpop.permute.xlu0 %444
      %446 = vrot.lane.b32.xlu0 %v378, 16
      %v447 = vpop.permute.xlu0 %446
      %448 = vrot.lane.b32.xlu0 %v379, 16
      %v449 = vpop.permute.xlu0 %448
      %450 = vrot.lane.b32.xlu0 %v380, 16
      %v451 = vpop.permute.xlu0 %450
      %452 = vrot.lane.b32.xlu0 %v381, 16
      %v453 = vpop.permute.xlu0 %452
      %454 = vrot.lane.b32.xlu0 %v382, 16
      %v455 = vpop.permute.xlu0 %454
      %vm456 = vcmp.lt.s32.totalorder %v400, 16
      %v457 = vsel %vm456, %v453, %v455
      %v458 = vsel %vm456, %v451, %v453
      %v459 = vsel %vm456, %v449, %v451
      %v460 = vsel %vm456, %v447, %v449
      %v461 = vsel %vm456, %v445, %v447
      %v462 = vsel %vm456, %v443, %v445
      %v463 = vsel %vm456, %v441, %v443
      %v464 = vsel %vm456, %v455, %v441
      %s465 = scalar_lea.vmem %s6, 8
      %v466 = vld [vmem:[%s465] sm:$0xff]
      %v468 = vperm.slane %v466, 0
      %v469 = vperm.slane %v466, 1
      %v470 = vperm.slane %v466, 2
      %v471 = vperm.slane %v466, 3
      %v472 = vperm.slane %v466, 4
      %v473 = vperm.slane %v466, 5
      %v474 = vperm.slane %v466, 6
      %v475 = vperm.slane %v466, 7
      %v484 = vmul.f32 %v464, %v468
      %v485 = vmul.f32 %v463, %v469
      %v486 = vmul.f32 %v462, %v470
      %v487 = vmul.f32 %v461, %v471
      %v488 = vmul.f32 %v460, %v472
      %v489 = vmul.f32 %v459, %v473
      %v490 = vmul.f32 %v458, %v474
      %v491 = vmul.f32 %v457, %v475
      %v492 = vpack.c.bf16 %v485, %v484
      %v493 = vpack.c.bf16 %v487, %v486
      %v494 = vpack.c.bf16 %v489, %v488
      %v495 = vpack.c.bf16 %v491, %v490
      %496 = vrot.lane.b32.xlu0 %v375, 15
      %v497 = vpop.permute.xlu0 %496
      %498 = vrot.lane.b32.xlu0 %v376, 15
      %v499 = vpop.permute.xlu0 %498
      %500 = vrot.lane.b32.xlu0 %v377, 15
      %v501 = vpop.permute.xlu0 %500
      %502 = vrot.lane.b32.xlu0 %v378, 15
      %v503 = vpop.permute.xlu0 %502
      %504 = vrot.lane.b32.xlu0 %v379, 15
      %v505 = vpop.permute.xlu0 %504
      %506 = vrot.lane.b32.xlu0 %v380, 15
      %v507 = vpop.permute.xlu0 %506
      %508 = vrot.lane.b32.xlu0 %v381, 15
      %v509 = vpop.permute.xlu0 %508
      %510 = vrot.lane.b32.xlu0 %v382, 15
      %v511 = vpop.permute.xlu0 %510
      %vm512 = vcmp.lt.s32.totalorder %v400, 15
      %v513 = vsel %vm512, %v509, %v511
      %v514 = vsel %vm512, %v507, %v509
      %v515 = vsel %vm512, %v505, %v507
      %v516 = vsel %vm512, %v503, %v505
      %v517 = vsel %vm512, %v501, %v503
      %v518 = vsel %vm512, %v499, %v501
      %v519 = vsel %vm512, %v497, %v499
      %v520 = vsel %vm512, %v511, %v497
      %s521 = scalar_lea.vmem %s6, 16
      %v522 = vld [vmem:[%s521] sm:$0xff]
      %v524 = vperm.slane %v522, 0
      %v525 = vperm.slane %v522, 1
      %v526 = vperm.slane %v522, 2
      %v527 = vperm.slane %v522, 3
      %v528 = vperm.slane %v522, 4
      %v529 = vperm.slane %v522, 5
      %v530 = vperm.slane %v522, 6
      %v531 = vperm.slane %v522, 7
      %v540 = vmul.f32 %v520, %v524
      %v541 = vmul.f32 %v519, %v525
      %v542 = vmul.f32 %v518, %v526
      %v543 = vmul.f32 %v517, %v527
      %v544 = vmul.f32 %v516, %v528
      %v545 = vmul.f32 %v515, %v529
      %v546 = vmul.f32 %v514, %v530
      %v547 = vmul.f32 %v513, %v531
      %v548 = vpack.c.bf16 %v541, %v540
      %v549 = vpack.c.bf16 %v543, %v542
      %v550 = vpack.c.bf16 %v545, %v544
      %v551 = vpack.c.bf16 %v547, %v546
      %552 = vrot.lane.b32.xlu0 %v375, 1
      %v553 = vpop.permute.xlu0 %552
      %554 = vrot.lane.b32.xlu0 %v376, 1
      %v555 = vpop.permute.xlu0 %554
      %556 = vrot.lane.b32.xlu0 %v377, 1
      %v557 = vpop.permute.xlu0 %556
      %558 = vrot.lane.b32.xlu0 %v378, 1
      %v559 = vpop.permute.xlu0 %558
      %560 = vrot.lane.b32.xlu0 %v379, 1
      %v561 = vpop.permute.xlu0 %560
      %562 = vrot.lane.b32.xlu0 %v380, 1
      %v563 = vpop.permute.xlu0 %562
      %564 = vrot.lane.b32.xlu0 %v381, 1
      %v565 = vpop.permute.xlu0 %564
      %566 = vrot.lane.b32.xlu0 %v382, 1
      %v567 = vpop.permute.xlu0 %566
      %vm568 = vcmp.lt.s32.totalorder %v400, 1
      %v569 = vsel %vm568, %v565, %v567
      %v570 = vsel %vm568, %v563, %v565
      %v571 = vsel %vm568, %v561, %v563
      %v572 = vsel %vm568, %v559, %v561
      %v573 = vsel %vm568, %v557, %v559
      %v574 = vsel %vm568, %v555, %v557
      %v575 = vsel %vm568, %v553, %v555
      %v576 = vsel %vm568, %v567, %v553
      %s577 = scalar_lea.vmem %s6, 24
      %v578 = vld [vmem:[%s577] sm:$0xff]
      %v580 = vperm.slane %v578, 0
      %v581 = vperm.slane %v578, 1
      %v582 = vperm.slane %v578, 2
      %v583 = vperm.slane %v578, 3
      %v584 = vperm.slane %v578, 4
      %v585 = vperm.slane %v578, 5
      %v586 = vperm.slane %v578, 6
      %v587 = vperm.slane %v578, 7
      %v596 = vmul.f32 %v576, %v580
      %v597 = vmul.f32 %v575, %v581
      %v598 = vmul.f32 %v574, %v582
      %v599 = vmul.f32 %v573, %v583
      %v600 = vmul.f32 %v572, %v584
      %v601 = vmul.f32 %v571, %v585
      %v602 = vmul.f32 %v570, %v586
      %v603 = vmul.f32 %v569, %v587
      %v604 = vpack.c.bf16 %v597, %v596
      %v605 = vpack.c.bf16 %v599, %v598
      %v606 = vpack.c.bf16 %v601, %v600
      %v607 = vpack.c.bf16 %v603, %v602
      %608 = vrot.lane.b32.xlu0 %v375, 127
      %v609 = vpop.permute.xlu0 %608
      %610 = vrot.lane.b32.xlu0 %v376, 127
      %v611 = vpop.permute.xlu0 %610
      %612 = vrot.lane.b32.xlu0 %v377, 127
      %v613 = vpop.permute.xlu0 %612
      %614 = vrot.lane.b32.xlu0 %v378, 127
      %v615 = vpop.permute.xlu0 %614
      %616 = vrot.lane.b32.xlu0 %v379, 127
      %v617 = vpop.permute.xlu0 %616
      %618 = vrot.lane.b32.xlu0 %v380, 127
      %v619 = vpop.permute.xlu0 %618
      %620 = vrot.lane.b32.xlu0 %v381, 127
      %v621 = vpop.permute.xlu0 %620
      %622 = vrot.lane.b32.xlu0 %v382, 127
      %v623 = vpop.permute.xlu0 %622
      %vm624 = vcmp.lt.s32.totalorder %v400, 127
      %v625 = vsel %vm624, %v621, %v623
      %v626 = vsel %vm624, %v619, %v621
      %v627 = vsel %vm624, %v617, %v619
      %v628 = vsel %vm624, %v615, %v617
      %v629 = vsel %vm624, %v613, %v615
      %v630 = vsel %vm624, %v611, %v613
      %v631 = vsel %vm624, %v609, %v611
      %v632 = vsel %vm624, %v623, %v609
      %s633 = scalar_lea.vmem %s6, 40
      %v634 = vld [vmem:[%s633] sm:$0xff]
      %v636 = vperm.slane %v634, 0
      %v637 = vperm.slane %v634, 1
      %v638 = vperm.slane %v634, 2
      %v639 = vperm.slane %v634, 3
      %v640 = vperm.slane %v634, 4
      %v641 = vperm.slane %v634, 5
      %v642 = vperm.slane %v634, 6
      %v643 = vperm.slane %v634, 7
      %v652 = vmul.f32 %v631, %v636
      %v653 = vmul.f32 %v630, %v637
      %v654 = vmul.f32 %v629, %v638
      %v655 = vmul.f32 %v628, %v639
      %v656 = vmul.f32 %v627, %v640
      %v657 = vmul.f32 %v626, %v641
      %v658 = vmul.f32 %v625, %v642
      %v659 = vmul.f32 %v632, %v643
      %v660 = vpack.c.bf16 %v653, %v652
      %v661 = vpack.c.bf16 %v655, %v654
      %v662 = vpack.c.bf16 %v657, %v656
      %v663 = vpack.c.bf16 %v659, %v658
      %664 = vrot.lane.b32.xlu0 %v375, 113
      %v665 = vpop.permute.xlu0 %664
      %666 = vrot.lane.b32.xlu0 %v376, 113
      %v667 = vpop.permute.xlu0 %666
      %668 = vrot.lane.b32.xlu0 %v377, 113
      %v669 = vpop.permute.xlu0 %668
      %670 = vrot.lane.b32.xlu0 %v378, 113
      %v671 = vpop.permute.xlu0 %670
      %672 = vrot.lane.b32.xlu0 %v379, 113
      %v673 = vpop.permute.xlu0 %672
      %674 = vrot.lane.b32.xlu0 %v380, 113
      %v675 = vpop.permute.xlu0 %674
      %676 = vrot.lane.b32.xlu0 %v381, 113
      %v677 = vpop.permute.xlu0 %676
      %678 = vrot.lane.b32.xlu0 %v382, 113
      %v679 = vpop.permute.xlu0 %678
      %vm680 = vcmp.lt.s32.totalorder %v400, 113
      %v681 = vsel %vm680, %v677, %v679
      %v682 = vsel %vm680, %v675, %v677
      %v683 = vsel %vm680, %v673, %v675
      %v684 = vsel %vm680, %v671, %v673
      %v685 = vsel %vm680, %v669, %v671
      %v686 = vsel %vm680, %v667, %v669
      %v687 = vsel %vm680, %v665, %v667
      %v688 = vsel %vm680, %v679, %v665
      %s689 = scalar_lea.vmem %s6, 48
      %v690 = vld [vmem:[%s689] sm:$0xff]
      %v692 = vperm.slane %v690, 0
      %v693 = vperm.slane %v690, 1
      %v694 = vperm.slane %v690, 2
      %v695 = vperm.slane %v690, 3
      %v696 = vperm.slane %v690, 4
      %v697 = vperm.slane %v690, 5
      %v698 = vperm.slane %v690, 6
      %v699 = vperm.slane %v690, 7
      %v708 = vmul.f32 %v687, %v692
      %v709 = vmul.f32 %v686, %v693
      %v710 = vmul.f32 %v685, %v694
      %v711 = vmul.f32 %v684, %v695
      %v712 = vmul.f32 %v683, %v696
      %v713 = vmul.f32 %v682, %v697
      %v714 = vmul.f32 %v681, %v698
      %v715 = vmul.f32 %v688, %v699
      %v716 = vpack.c.bf16 %v709, %v708
      %v717 = vpack.c.bf16 %v711, %v710
      %v718 = vpack.c.bf16 %v713, %v712
      %v719 = vpack.c.bf16 %v715, %v714
      %720 = vrot.lane.b32.xlu0 %v375, 112
      %v721 = vpop.permute.xlu0 %720
      %722 = vrot.lane.b32.xlu0 %v376, 112
      %v723 = vpop.permute.xlu0 %722
      %724 = vrot.lane.b32.xlu0 %v377, 112
      %v725 = vpop.permute.xlu0 %724
      %726 = vrot.lane.b32.xlu0 %v378, 112
      %v727 = vpop.permute.xlu0 %726
      %728 = vrot.lane.b32.xlu0 %v379, 112
      %v729 = vpop.permute.xlu0 %728
      %730 = vrot.lane.b32.xlu0 %v380, 112
      %v731 = vpop.permute.xlu0 %730
      %732 = vrot.lane.b32.xlu0 %v381, 112
      %v733 = vpop.permute.xlu0 %732
      %734 = vrot.lane.b32.xlu0 %v382, 112
      %v735 = vpop.permute.xlu0 %734
      %vm736 = vcmp.lt.s32.totalorder %v400, 112
      %v737 = vsel %vm736, %v733, %v735
      %v738 = vsel %vm736, %v731, %v733
      %v739 = vsel %vm736, %v729, %v731
      %v740 = vsel %vm736, %v727, %v729
      %v741 = vsel %vm736, %v725, %v727
      %v742 = vsel %vm736, %v723, %v725
      %v743 = vsel %vm736, %v721, %v723
      %v744 = vsel %vm736, %v735, %v721
      %s745 = scalar_lea.vmem %s6, 56
      %v746 = vld [vmem:[%s745] sm:$0xff]
      %v748 = vperm.slane %v746, 0
      %v749 = vperm.slane %v746, 1
      %v750 = vperm.slane %v746, 2
      %v751 = vperm.slane %v746, 3
      %v752 = vperm.slane %v746, 4
      %v753 = vperm.slane %v746, 5
      %v754 = vperm.slane %v746, 6
      %v755 = vperm.slane %v746, 7
      %v764 = vmul.f32 %v743, %v748
      %v765 = vmul.f32 %v742, %v749
      %v766 = vmul.f32 %v741, %v750
      %v767 = vmul.f32 %v740, %v751
      %v768 = vmul.f32 %v739, %v752
      %v769 = vmul.f32 %v738, %v753
      %v770 = vmul.f32 %v737, %v754
      %v771 = vmul.f32 %v744, %v755
      %v772 = vpack.c.bf16 %v765, %v764
      %v773 = vpack.c.bf16 %v767, %v766
      %v774 = vpack.c.bf16 %v769, %v768
      %v775 = vpack.c.bf16 %v771, %v770
      %776 = vrot.lane.b32.xlu0 %v375, 111
      %v777 = vpop.permute.xlu0 %776
      %778 = vrot.lane.b32.xlu0 %v376, 111
      %v779 = vpop.permute.xlu0 %778
      %780 = vrot.lane.b32.xlu0 %v377, 111
      %v781 = vpop.permute.xlu0 %780
      %782 = vrot.lane.b32.xlu0 %v378, 111
      %v783 = vpop.permute.xlu0 %782
      %784 = vrot.lane.b32.xlu0 %v379, 111
      %v785 = vpop.permute.xlu0 %784
      %786 = vrot.lane.b32.xlu0 %v380, 111
      %v787 = vpop.permute.xlu0 %786
      %788 = vrot.lane.b32.xlu0 %v381, 111
      %v789 = vpop.permute.xlu0 %788
      %790 = vrot.lane.b32.xlu0 %v382, 111
      %v791 = vpop.permute.xlu0 %790
      %vm792 = vcmp.lt.s32.totalorder %v400, 111
      %v793 = vsel %vm792, %v789, %v791
      %v794 = vsel %vm792, %v787, %v789
      %v795 = vsel %vm792, %v785, %v787
      %v796 = vsel %vm792, %v783, %v785
      %v797 = vsel %vm792, %v781, %v783
      %v798 = vsel %vm792, %v779, %v781
      %v799 = vsel %vm792, %v777, %v779
      %v800 = vsel %vm792, %v791, %v777
      %s801 = scalar_lea.vmem %s6, 64
      %v802 = vld [vmem:[%s801] sm:$0xff]
      %v804 = vperm.slane %v802, 0
      %v805 = vperm.slane %v802, 1
      %v806 = vperm.slane %v802, 2
      %v807 = vperm.slane %v802, 3
      %v808 = vperm.slane %v802, 4
      %v809 = vperm.slane %v802, 5
      %v810 = vperm.slane %v802, 6
      %v811 = vperm.slane %v802, 7
      %v820 = vmul.f32 %v799, %v804
      %v821 = vmul.f32 %v798, %v805
      %v822 = vmul.f32 %v797, %v806
      %v823 = vmul.f32 %v796, %v807
      %v824 = vmul.f32 %v795, %v808
      %v825 = vmul.f32 %v794, %v809
      %v826 = vmul.f32 %v793, %v810
      %v827 = vmul.f32 %v800, %v811
      %v828 = vpack.c.bf16 %v821, %v820
      %v829 = vpack.c.bf16 %v823, %v822
      %v830 = vpack.c.bf16 %v825, %v824
      %v831 = vpack.c.bf16 %v827, %v826
      %v836 = vunpack.c.l.b16 %v436
      %v837 = vunpack.c.h.b16 %v436
      %v838 = vunpack.c.l.b16 %v437
      %v839 = vunpack.c.h.b16 %v437
      %v840 = vunpack.c.l.b16 %v438
      %v841 = vunpack.c.h.b16 %v438
      %v842 = vunpack.c.l.b16 %v439
      %v843 = vunpack.c.h.b16 %v439
      %v844 = vpack.c.b16 %v836, %v836
      %v845 = vpack.c.b16 %v837, %v837
      %v846 = vpack.c.b16 %v838, %v838
      %v847 = vpack.c.b16 %v839, %v839
      %v848 = vpack.c.b16 %v840, %v840
      %v849 = vpack.c.b16 %v841, %v841
      %v850 = vpack.c.b16 %v842, %v842
      %v851 = vpack.c.b16 %v843, %v843
      %v856 = vunpack.c.l.b16 %v492
      %v857 = vunpack.c.h.b16 %v492
      %v858 = vunpack.c.l.b16 %v493
      %v859 = vunpack.c.h.b16 %v493
      %v860 = vunpack.c.l.b16 %v494
      %v861 = vunpack.c.h.b16 %v494
      %v862 = vunpack.c.l.b16 %v495
      %v863 = vunpack.c.h.b16 %v495
      %v864 = vpack.c.b16 %v856, %v856
      %v865 = vpack.c.b16 %v857, %v857
      %v866 = vpack.c.b16 %v858, %v858
      %v867 = vpack.c.b16 %v859, %v859
      %v868 = vpack.c.b16 %v860, %v860
      %v869 = vpack.c.b16 %v861, %v861
      %v870 = vpack.c.b16 %v862, %v862
      %v871 = vpack.c.b16 %v863, %v863
      %v872 = vrot.slane %v864, 6
      %v873 = vrot.slane %v865, 6
      %v874 = vrot.slane %v866, 6
      %v875 = vrot.slane %v867, 6
      %v876 = vrot.slane %v868, 6
      %v877 = vrot.slane %v869, 6
      %v878 = vrot.slane %v870, 6
      %v879 = vrot.slane %v871, 6
      %v884 = vunpack.c.l.b16 %v548
      %v885 = vunpack.c.h.b16 %v548
      %v886 = vunpack.c.l.b16 %v549
      %v887 = vunpack.c.h.b16 %v549
      %v888 = vunpack.c.l.b16 %v550
      %v889 = vunpack.c.h.b16 %v550
      %v890 = vunpack.c.l.b16 %v551
      %v891 = vunpack.c.h.b16 %v551
      %v892 = vpack.c.b16 %v884, %v884
      %v893 = vpack.c.b16 %v885, %v885
      %v894 = vpack.c.b16 %v886, %v886
      %v895 = vpack.c.b16 %v887, %v887
      %v896 = vpack.c.b16 %v888, %v888
      %v897 = vpack.c.b16 %v889, %v889
      %v898 = vpack.c.b16 %v890, %v890
      %v899 = vpack.c.b16 %v891, %v891
      %v904 = vunpack.c.l.b16 %v604
      %v905 = vunpack.c.h.b16 %v604
      %v906 = vunpack.c.l.b16 %v605
      %v907 = vunpack.c.h.b16 %v605
      %v908 = vunpack.c.l.b16 %v606
      %v909 = vunpack.c.h.b16 %v606
      %v910 = vunpack.c.l.b16 %v607
      %v911 = vunpack.c.h.b16 %v607
      %v912 = vpack.c.b16 %v904, %v904
      %v913 = vpack.c.b16 %v905, %v905
      %v914 = vpack.c.b16 %v906, %v906
      %v915 = vpack.c.b16 %v907, %v907
      %v916 = vpack.c.b16 %v908, %v908
      %v917 = vpack.c.b16 %v909, %v909
      %v918 = vpack.c.b16 %v910, %v910
      %v919 = vpack.c.b16 %v911, %v911
      %v920 = vrot.slane %v912, 2
      %v921 = vrot.slane %v913, 2
      %v922 = vrot.slane %v914, 2
      %v923 = vrot.slane %v915, 2
      %v924 = vrot.slane %v916, 2
      %v925 = vrot.slane %v917, 2
      %v926 = vrot.slane %v918, 2
      %v927 = vrot.slane %v919, 2
      %v932 = vunpack.c.l.b16 %v660
      %v933 = vunpack.c.h.b16 %v660
      %v934 = vunpack.c.l.b16 %v661
      %v935 = vunpack.c.h.b16 %v661
      %v936 = vunpack.c.l.b16 %v662
      %v937 = vunpack.c.h.b16 %v662
      %v938 = vunpack.c.l.b16 %v663
      %v939 = vunpack.c.h.b16 %v663
      %v940 = vpack.c.b16 %v932, %v932
      %v941 = vpack.c.b16 %v933, %v933
      %v942 = vpack.c.b16 %v934, %v934
      %v943 = vpack.c.b16 %v935, %v935
      %v944 = vpack.c.b16 %v936, %v936
      %v945 = vpack.c.b16 %v937, %v937
      %v946 = vpack.c.b16 %v938, %v938
      %v947 = vpack.c.b16 %v939, %v939
      %v948 = vrot.slane %v940, 6
      %v949 = vrot.slane %v941, 6
      %v950 = vrot.slane %v942, 6
      %v951 = vrot.slane %v943, 6
      %v952 = vrot.slane %v944, 6
      %v953 = vrot.slane %v945, 6
      %v954 = vrot.slane %v946, 6
      %v955 = vrot.slane %v947, 6
      %v960 = vunpack.c.l.b16 %v716
      %v961 = vunpack.c.h.b16 %v716
      %v962 = vunpack.c.l.b16 %v717
      %v963 = vunpack.c.h.b16 %v717
      %v964 = vunpack.c.l.b16 %v718
      %v965 = vunpack.c.h.b16 %v718
      %v966 = vunpack.c.l.b16 %v719
      %v967 = vunpack.c.h.b16 %v719
      %v968 = vpack.c.b16 %v960, %v960
      %v969 = vpack.c.b16 %v961, %v961
      %v970 = vpack.c.b16 %v962, %v962
      %v971 = vpack.c.b16 %v963, %v963
      %v972 = vpack.c.b16 %v964, %v964
      %v973 = vpack.c.b16 %v965, %v965
      %v974 = vpack.c.b16 %v966, %v966
      %v975 = vpack.c.b16 %v967, %v967
      %v980 = vunpack.c.l.b16 %v772
      %v981 = vunpack.c.h.b16 %v772
      %v982 = vunpack.c.l.b16 %v773
      %v983 = vunpack.c.h.b16 %v773
      %v984 = vunpack.c.l.b16 %v774
      %v985 = vunpack.c.h.b16 %v774
      %v986 = vunpack.c.l.b16 %v775
      %v987 = vunpack.c.h.b16 %v775
      %v988 = vpack.c.b16 %v980, %v980
      %v989 = vpack.c.b16 %v981, %v981
      %v990 = vpack.c.b16 %v982, %v982
      %v991 = vpack.c.b16 %v983, %v983
      %v992 = vpack.c.b16 %v984, %v984
      %v993 = vpack.c.b16 %v985, %v985
      %v994 = vpack.c.b16 %v986, %v986
      %v995 = vpack.c.b16 %v987, %v987
      %v996 = vrot.slane %v988, 2
      %v997 = vrot.slane %v989, 2
      %v998 = vrot.slane %v990, 2
      %v999 = vrot.slane %v991, 2
      %v1000 = vrot.slane %v992, 2
      %v1001 = vrot.slane %v993, 2
      %v1002 = vrot.slane %v994, 2
      %v1003 = vrot.slane %v995, 2
      %v1008 = vunpack.c.l.b16 %v828
      %v1009 = vunpack.c.h.b16 %v828
      %v1010 = vunpack.c.l.b16 %v829
      %v1011 = vunpack.c.h.b16 %v829
      %v1012 = vunpack.c.l.b16 %v830
      %v1013 = vunpack.c.h.b16 %v830
      %v1014 = vunpack.c.l.b16 %v831
      %v1015 = vunpack.c.h.b16 %v831
      %v1016 = vpack.c.b16 %v1008, %v1008
      %v1017 = vpack.c.b16 %v1009, %v1009
      %v1018 = vpack.c.b16 %v1010, %v1010
      %v1019 = vpack.c.b16 %v1011, %v1011
      %v1020 = vpack.c.b16 %v1012, %v1012
      %v1021 = vpack.c.b16 %v1013, %v1013
      %v1022 = vpack.c.b16 %v1014, %v1014
      %v1023 = vpack.c.b16 %v1015, %v1015
      %vm1024 = vcmask 1041408
      %v1027 = vsel %vm1024, %v844, %v872
      %v1030 = vsel %vm1024, %v845, %v873
      %v1033 = vsel %vm1024, %v846, %v874
      %v1036 = vsel %vm1024, %v847, %v875
      %v1039 = vsel %vm1024, %v848, %v876
      %v1042 = vsel %vm1024, %v849, %v877
      %v1045 = vsel %vm1024, %v850, %v878
      %v1048 = vsel %vm1024, %v851, %v879
      %vm1049 = vcmask 1043456
      %v1051 = vsel %vm1049, %v1027, %v892
      %v1053 = vsel %vm1049, %v1030, %v893
      %v1055 = vsel %vm1049, %v1033, %v894
      %v1057 = vsel %vm1049, %v1036, %v895
      %v1059 = vsel %vm1049, %v1039, %v896
      %v1061 = vsel %vm1049, %v1042, %v897
      %v1063 = vsel %vm1049, %v1045, %v898
      %v1065 = vsel %vm1049, %v1048, %v899
      %vm1066 = vcmask 1045504
      %v1068 = vsel %vm1066, %v1051, %v920
      %v1071 = vsel %vm1066, %v1053, %v921
      %v1074 = vsel %vm1066, %v1055, %v922
      %v1077 = vsel %vm1066, %v1057, %v923
      %v1080 = vsel %vm1066, %v1059, %v924
      %v1083 = vsel %vm1066, %v1061, %v925
      %v1086 = vsel %vm1066, %v1063, %v926
      %v1089 = vsel %vm1066, %v1065, %v927
      %v1092 = vsel %vm1024, %v322, %v948
      %v1094 = vsel %vm1024, %v323, %v949
      %v1096 = vsel %vm1024, %v328, %v950
      %v1098 = vsel %vm1024, %v329, %v951
      %v1100 = vsel %vm1024, %v334, %v952
      %v1102 = vsel %vm1024, %v335, %v953
      %v1104 = vsel %vm1024, %v340, %v954
      %v1106 = vsel %vm1024, %v341, %v955
      %v1108 = vsel %vm1049, %v1092, %v968
      %v1110 = vsel %vm1049, %v1094, %v969
      %v1112 = vsel %vm1049, %v1096, %v970
      %v1114 = vsel %vm1049, %v1098, %v971
      %v1116 = vsel %vm1049, %v1100, %v972
      %v1118 = vsel %vm1049, %v1102, %v973
      %v1120 = vsel %vm1049, %v1104, %v974
      %v1122 = vsel %vm1049, %v1106, %v975
      %v1124 = vsel %vm1066, %v1108, %v996
      %v1127 = vsel %vm1066, %v1110, %v997
      %v1130 = vsel %vm1066, %v1112, %v998
      %v1133 = vsel %vm1066, %v1114, %v999
      %v1136 = vsel %vm1066, %v1116, %v1000
      %v1139 = vsel %vm1066, %v1118, %v1001
      %v1142 = vsel %vm1066, %v1120, %v1002
      %v1145 = vsel %vm1066, %v1122, %v1003
      %v1147 = vld [vmem:[%s2] sm:$0xf]
      %v1148 = vld [vmem:[%s3] sm:$0xff]
      %1150 = vset.pattern.permute.xlu0 0
      %1151 = vperm.xlu0 %1150, %v1148
      %v1152 = vpop.permute.xlu0 %1151
      %vm1154 = vcmask 293888
      %v1156 = vsel %vm1154, %v1147, 0
      %v1159 = vsel %vm1024, %v1016, 0
      %v1162 = vsel %vm1024, %v1017, 0
      %v1165 = vsel %vm1024, %v1018, 0
      %v1168 = vsel %vm1024, %v1019, 0
      %v1171 = vsel %vm1024, %v1020, 0
      %v1174 = vsel %vm1024, %v1021, 0
      %v1177 = vsel %vm1024, %v1022, 0
      %v1180 = vsel %vm1024, %v1023, 0
      %1182 = vmatpush.bf16.msra.mxu0 0
      %1183 = vmatpush.bf16.msra.mxu0 0
      %1184 = vmatpush.bf16.msra.mxu0 0
      %1185 = vmatpush.bf16.msra.mxu0 0
      %1186 = vmatpush.bf16.msra.mxu0 0
      %1187 = vmatpush.bf16.msra.mxu0 %v1159
      %1188 = vmatpush.bf16.msra.mxu0 %v1124
      %1189 = vmatpush.bf16.msra.mxu0 %v1068
      %1190 = vmatmul.bf16.gmra.mxu0 %v1156
      %v1191 = vpop.f32.mrf.mxu0
      %v1192 = vadd.f32 %v1152, %v1191
      %v1193 = vpop.f32.mrf.mxu0
      %1194 = vdwg.mxu0
      %1195 = vmatpush.bf16.msra.mxu0 0
      %1196 = vmatpush.bf16.msra.mxu0 0
      %1197 = vmatpush.bf16.msra.mxu0 0
      %1198 = vmatpush.bf16.msra.mxu0 0
      %1199 = vmatpush.bf16.msra.mxu0 0
      %1200 = vmatpush.bf16.msra.mxu0 %v1162
      %1201 = vmatpush.bf16.msra.mxu0 %v1127
      %1202 = vmatpush.bf16.msra.mxu0 %v1071
      %1203 = vmatmul.bf16.gmra.mxu0 %v1156
      %v1204 = vpop.f32.mrf.mxu0
      %v1205 = vadd.f32 %v1152, %v1204
      %v1206 = vpop.f32.mrf.mxu0
      %1207 = vdwg.mxu0
      %1208 = vmatpush.bf16.msra.mxu0 0
      %1209 = vmatpush.bf16.msra.mxu0 0
      %1210 = vmatpush.bf16.msra.mxu0 0
      %1211 = vmatpush.bf16.msra.mxu0 0
      %1212 = vmatpush.bf16.msra.mxu0 0
      %1213 = vmatpush.bf16.msra.mxu0 %v1165
      %1214 = vmatpush.bf16.msra.mxu0 %v1130
      %1215 = vmatpush.bf16.msra.mxu0 %v1074
      %1216 = vmatmul.bf16.gmra.mxu0 %v1156
      %v1217 = vpop.f32.mrf.mxu0
      %v1218 = vadd.f32 %v1152, %v1217
      %v1219 = vpop.f32.mrf.mxu0
      %1220 = vdwg.mxu0
      %1221 = vmatpush.bf16.msra.mxu0 0
      %1222 = vmatpush.bf16.msra.mxu0 0
      %1223 = vmatpush.bf16.msra.mxu0 0
      %1224 = vmatpush.bf16.msra.mxu0 0
      %1225 = vmatpush.bf16.msra.mxu0 0
      %1226 = vmatpush.bf16.msra.mxu0 %v1168
      %1227 = vmatpush.bf16.msra.mxu0 %v1133
      %1228 = vmatpush.bf16.msra.mxu0 %v1077
      %1229 = vmatmul.bf16.gmra.mxu0 %v1156
      %v1230 = vpop.f32.mrf.mxu0
      %v1231 = vadd.f32 %v1152, %v1230
      %v1232 = vpop.f32.mrf.mxu0
      %1233 = vdwg.mxu0
      %1234 = vmatpush.bf16.msra.mxu0 0
      %1235 = vmatpush.bf16.msra.mxu0 0
      %1236 = vmatpush.bf16.msra.mxu0 0
      %1237 = vmatpush.bf16.msra.mxu0 0
      %1238 = vmatpush.bf16.msra.mxu0 0
      %1239 = vmatpush.bf16.msra.mxu0 %v1171
      %1240 = vmatpush.bf16.msra.mxu0 %v1136
      %1241 = vmatpush.bf16.msra.mxu0 %v1080
      %1242 = vmatmul.bf16.gmra.mxu0 %v1156
      %v1243 = vpop.f32.mrf.mxu0
      %v1244 = vadd.f32 %v1152, %v1243
      %v1245 = vpop.f32.mrf.mxu0
      %1246 = vdwg.mxu0
      %1247 = vmatpush.bf16.msra.mxu0 0
      %1248 = vmatpush.bf16.msra.mxu0 0
      %1249 = vmatpush.bf16.msra.mxu0 0
      %1250 = vmatpush.bf16.msra.mxu0 0
      %1251 = vmatpush.bf16.msra.mxu0 0
      %1252 = vmatpush.bf16.msra.mxu0 %v1174
      %1253 = vmatpush.bf16.msra.mxu0 %v1139
      %1254 = vmatpush.bf16.msra.mxu0 %v1083
      %1255 = vmatmul.bf16.gmra.mxu0 %v1156
      %v1256 = vpop.f32.mrf.mxu0
      %v1257 = vadd.f32 %v1152, %v1256
      %v1258 = vpop.f32.mrf.mxu0
      %1259 = vdwg.mxu0
      %1260 = vmatpush.bf16.msra.mxu0 0
      %1261 = vmatpush.bf16.msra.mxu0 0
      %1262 = vmatpush.bf16.msra.mxu0 0
      %1263 = vmatpush.bf16.msra.mxu0 0
      %1264 = vmatpush.bf16.msra.mxu0 0
      %1265 = vmatpush.bf16.msra.mxu0 %v1177
      %1266 = vmatpush.bf16.msra.mxu0 %v1142
      %1267 = vmatpush.bf16.msra.mxu0 %v1086
      %1268 = vmatmul.bf16.gmra.mxu0 %v1156
      %v1269 = vpop.f32.mrf.mxu0
      %v1270 = vadd.f32 %v1152, %v1269
      %v1271 = vpop.f32.mrf.mxu0
      %1272 = vdwg.mxu0
      %1273 = vmatpush.bf16.msra.mxu0 0
      %1274 = vmatpush.bf16.msra.mxu0 0
      %1275 = vmatpush.bf16.msra.mxu0 0
      %1276 = vmatpush.bf16.msra.mxu0 0
      %1277 = vmatpush.bf16.msra.mxu0 0
      %1278 = vmatpush.bf16.msra.mxu0 %v1180
      %1279 = vmatpush.bf16.msra.mxu0 %v1145
      %1280 = vmatpush.bf16.msra.mxu0 %v1089
      %1281 = vmatmul.bf16.gmra.mxu0 %v1156
      %v1282 = vpop.f32.mrf.mxu0
      %v1283 = vadd.f32 %v1152, %v1282
      %v1284 = vpop.f32.mrf.mxu0
      %1285 = vdwg.mxu0
      %v1286 = vmax.f32 %v1192, 0.0
      %v1287 = vmax.f32 %v1205, 0.0
      %v1288 = vmax.f32 %v1218, 0.0
      %v1289 = vmax.f32 %v1231, 0.0
      %v1290 = vmax.f32 %v1244, 0.0
      %v1291 = vmax.f32 %v1257, 0.0
      %v1292 = vmax.f32 %v1270, 0.0
      %v1293 = vmax.f32 %v1283, 0.0
      %v1294 = vpack.c.bf16 %v1287, %v1286
      %v1295 = vpack.c.bf16 %v1289, %v1288
      %v1296 = vpack.c.bf16 %v1291, %v1290
      %v1297 = vpack.c.bf16 %v1293, %v1292
      %v1302 = vunpack.c.l.b16 %v1294
      %v1303 = vunpack.c.h.b16 %v1294
      %v1304 = vunpack.c.l.b16 %v1295
      %v1305 = vunpack.c.h.b16 %v1295
      %v1306 = vunpack.c.l.b16 %v1296
      %v1307 = vunpack.c.h.b16 %v1296
      %v1308 = vunpack.c.l.b16 %v1297
      %v1309 = vunpack.c.h.b16 %v1297
      %v1310 = vpack.c.b16 %v1302, %v1302
      %v1311 = vpack.c.b16 %v1303, %v1303
      %v1312 = vpack.c.b16 %v1304, %v1304
      %v1313 = vpack.c.b16 %v1305, %v1305
      %v1314 = vpack.c.b16 %v1306, %v1306
      %v1315 = vpack.c.b16 %v1307, %v1307
      %v1316 = vpack.c.b16 %v1308, %v1308
      %v1317 = vpack.c.b16 %v1309, %v1309
      %v1318 = vrot.slane %v353, 4
      %v1319 = vrot.slane %v355, 4
      %v1320 = vrot.slane %v359, 4
      %v1321 = vrot.slane %v361, 4
      %v1322 = vrot.slane %v365, 4
      %v1323 = vrot.slane %v367, 4
      %v1324 = vrot.slane %v371, 4
      %v1325 = vrot.slane %v373, 4
      %v1328 = vsel %vm1049, %v1310, %v1318
      %v1331 = vsel %vm1049, %v1311, %v1319
      %v1334 = vsel %vm1049, %v1312, %v1320
      %v1337 = vsel %vm1049, %v1313, %v1321
      %v1340 = vsel %vm1049, %v1314, %v1322
      %v1343 = vsel %vm1049, %v1315, %v1323
      %v1346 = vsel %vm1049, %v1316, %v1324
      %v1349 = vsel %vm1049, %v1317, %v1325
      %v1350 = vld [vmem:[%s4] sm:$0xf]
      %v1351 = vld [vmem:[%s5] sm:$0xff]
      %1353 = vset.pattern.permute.xlu0 0
      %1354 = vperm.xlu0 %1353, %v1351
      %v1355 = vpop.permute.xlu0 %1354
      %vm1357 = vcmask 97280
      %v1359 = vsel %vm1357, %v1350, 0
      %v1361 = vsel %vm1066, %v1328, 0
      %v1363 = vsel %vm1066, %v1331, 0
      %v1365 = vsel %vm1066, %v1334, 0
      %v1367 = vsel %vm1066, %v1337, 0
      %v1369 = vsel %vm1066, %v1340, 0
      %v1371 = vsel %vm1066, %v1343, 0
      %v1373 = vsel %vm1066, %v1346, 0
      %v1375 = vsel %vm1066, %v1349, 0
      %1377 = vmatpush.bf16.msra.mxu0 0
      %1378 = vmatpush.bf16.msra.mxu0 0
      %1379 = vmatpush.bf16.msra.mxu0 0
      %1380 = vmatpush.bf16.msra.mxu0 0
      %1381 = vmatpush.bf16.msra.mxu0 0
      %1382 = vmatpush.bf16.msra.mxu0 0
      %1383 = vmatpush.bf16.msra.mxu0 0
      %1384 = vmatpush.bf16.msra.mxu0 %v1361
      %1385 = vmatmul.bf16.gmra.mxu0 %v1359
      %v1386 = vpop.f32.mrf.mxu0
      %v1387 = vadd.f32 %v1355, %v1386
      %v1388 = vpop.f32.mrf.mxu0
      %1389 = vdwg.mxu0
      %1390 = vmatpush.bf16.msra.mxu0 0
      %1391 = vmatpush.bf16.msra.mxu0 0
      %1392 = vmatpush.bf16.msra.mxu0 0
      %1393 = vmatpush.bf16.msra.mxu0 0
      %1394 = vmatpush.bf16.msra.mxu0 0
      %1395 = vmatpush.bf16.msra.mxu0 0
      %1396 = vmatpush.bf16.msra.mxu0 0
      %1397 = vmatpush.bf16.msra.mxu0 %v1363
      %1398 = vmatmul.bf16.gmra.mxu0 %v1359
      %v1399 = vpop.f32.mrf.mxu0
      %v1400 = vadd.f32 %v1355, %v1399
      %v1401 = vpop.f32.mrf.mxu0
      %1402 = vdwg.mxu0
      %1403 = vmatpush.bf16.msra.mxu0 0
      %1404 = vmatpush.bf16.msra.mxu0 0
      %1405 = vmatpush.bf16.msra.mxu0 0
      %1406 = vmatpush.bf16.msra.mxu0 0
      %1407 = vmatpush.bf16.msra.mxu0 0
      %1408 = vmatpush.bf16.msra.mxu0 0
      %1409 = vmatpush.bf16.msra.mxu0 0
      %1410 = vmatpush.bf16.msra.mxu0 %v1365
      %1411 = vmatmul.bf16.gmra.mxu0 %v1359
      %v1412 = vpop.f32.mrf.mxu0
      %v1413 = vadd.f32 %v1355, %v1412
      %v1414 = vpop.f32.mrf.mxu0
      %1415 = vdwg.mxu0
      %1416 = vmatpush.bf16.msra.mxu0 0
      %1417 = vmatpush.bf16.msra.mxu0 0
      %1418 = vmatpush.bf16.msra.mxu0 0
      %1419 = vmatpush.bf16.msra.mxu0 0
      %1420 = vmatpush.bf16.msra.mxu0 0
      %1421 = vmatpush.bf16.msra.mxu0 0
      %1422 = vmatpush.bf16.msra.mxu0 0
      %1423 = vmatpush.bf16.msra.mxu0 %v1367
      %1424 = vmatmul.bf16.gmra.mxu0 %v1359
      %v1425 = vpop.f32.mrf.mxu0
      %v1426 = vadd.f32 %v1355, %v1425
      %v1427 = vpop.f32.mrf.mxu0
      %1428 = vdwg.mxu0
      %1429 = vmatpush.bf16.msra.mxu0 0
      %1430 = vmatpush.bf16.msra.mxu0 0
      %1431 = vmatpush.bf16.msra.mxu0 0
      %1432 = vmatpush.bf16.msra.mxu0 0
      %1433 = vmatpush.bf16.msra.mxu0 0
      %1434 = vmatpush.bf16.msra.mxu0 0
      %1435 = vmatpush.bf16.msra.mxu0 0
      %1436 = vmatpush.bf16.msra.mxu0 %v1369
      %1437 = vmatmul.bf16.gmra.mxu0 %v1359
      %v1438 = vpop.f32.mrf.mxu0
      %v1439 = vadd.f32 %v1355, %v1438
      %v1440 = vpop.f32.mrf.mxu0
      %1441 = vdwg.mxu0
      %1442 = vmatpush.bf16.msra.mxu0 0
      %1443 = vmatpush.bf16.msra.mxu0 0
      %1444 = vmatpush.bf16.msra.mxu0 0
      %1445 = vmatpush.bf16.msra.mxu0 0
      %1446 = vmatpush.bf16.msra.mxu0 0
      %1447 = vmatpush.bf16.msra.mxu0 0
      %1448 = vmatpush.bf16.msra.mxu0 0
      %1449 = vmatpush.bf16.msra.mxu0 %v1371
      %1450 = vmatmul.bf16.gmra.mxu0 %v1359
      %v1451 = vpop.f32.mrf.mxu0
      %v1452 = vadd.f32 %v1355, %v1451
      %v1453 = vpop.f32.mrf.mxu0
      %1454 = vdwg.mxu0
      %1455 = vmatpush.bf16.msra.mxu0 0
      %1456 = vmatpush.bf16.msra.mxu0 0
      %1457 = vmatpush.bf16.msra.mxu0 0
      %1458 = vmatpush.bf16.msra.mxu0 0
      %1459 = vmatpush.bf16.msra.mxu0 0
      %1460 = vmatpush.bf16.msra.mxu0 0
      %1461 = vmatpush.bf16.msra.mxu0 0
      %1462 = vmatpush.bf16.msra.mxu0 %v1373
      %1463 = vmatmul.bf16.gmra.mxu0 %v1359
      %v1464 = vpop.f32.mrf.mxu0
      %v1465 = vadd.f32 %v1355, %v1464
      %v1466 = vpop.f32.mrf.mxu0
      %1467 = vdwg.mxu0
      %1468 = vmatpush.bf16.msra.mxu0 0
      %1469 = vmatpush.bf16.msra.mxu0 0
      %1470 = vmatpush.bf16.msra.mxu0 0
      %1471 = vmatpush.bf16.msra.mxu0 0
      %1472 = vmatpush.bf16.msra.mxu0 0
      %1473 = vmatpush.bf16.msra.mxu0 0
      %1474 = vmatpush.bf16.msra.mxu0 0
      %1475 = vmatpush.bf16.msra.mxu0 %v1375
      %1476 = vmatmul.bf16.gmra.mxu0 %v1359
      %v1477 = vpop.f32.mrf.mxu0
      %v1478 = vadd.f32 %v1355, %v1477
      %v1479 = vpop.f32.mrf.mxu0
      %1480 = vdwg.mxu0
      %v1481 = vpack.c.bf16 %v1400, %v1387
      %1482 = vst [vmem:[%s310] sm:$0xff] %v1481
      %v1483 = vpack.c.bf16 %v1426, %v1413
      %s1484 = scalar_lea.vmem %s310, 8
      %1485 = vst [vmem:[%s1484] sm:$0xff] %v1483
      %v1486 = vpack.c.bf16 %v1452, %v1439
      %s1487 = scalar_lea.vmem %s310, 16
      %1488 = vst [vmem:[%s1487] sm:$0xff] %v1486
      %v1489 = vpack.c.bf16 %v1478, %v1465
      %s1490 = scalar_lea.vmem %s310, 24
      %1491 = vst [vmem:[%s1490] sm:$0xff] %v1489
      %s1492 = smul.u32 4, %s18
      %p1493 = scmp.lt.s32.totalorder %s1492, 7
      %s1494 = scalar_select %p1493, %s1492, 7
      %s1495 = smul.addr %s1494, 2
      %s1496 = smul.addr %s1495, 4
      %s1497 = scalar_lea.vmem %s7, %s1496
      // Predicated region
      $region49: #{merge_module_forward.1} parent=47 // pred_check
        %p1498 = pneg %p193
      $region50: #{merge_module_forward.1} parent=47 // pred_check_branch
        %1500 = sbr.rel (%p1498) target = $region52
      $region51: #{merge_module_forward.1} parent=47 // pred_region
        %s1501 = smul.u32 4, %s18
      $region52: #{merge_module_forward.1} parent=47 // pred_fallthru
        _
    $region48: #{merge_module_forward.1} parent=5 // pred_fallthru
      _
    %p1502 = scmp.le.s32.totalorder 2, %s13
    // Predicated region
    $region53: #{merge_module_forward.1} parent=5 // pred_check
      %p1503 = pneg %p1502
    $region54: #{merge_module_forward.1} parent=5 // pred_check_branch
      %1505 = sbr.rel (%p1503) target = $region56
    $region55: #{merge_module_forward.1} parent=5 // pred_region
      %s1506 = ssub.s32 %s13, 2
      // Predicated region
      $region57: #{merge_module_forward.1} parent=55 // pred_check
        %p1507 = pneg %p199
      $region58: #{merge_module_forward.1} parent=55 // pred_check_branch
        %1509 = sbr.rel (%p1507) target = $region60
      $region59: #{merge_module_forward.1} parent=55 // pred_region
        %s1510 = smul.u32 4, %s19
        %p1511 = scmp.lt.s32.totalorder %s1510, 7
        %s1512 = scalar_select %p1511, %s1510, 7
        %s1513 = smul.addr %s1512, 2
        %s1514 = smul.addr %s1513, 4
        %s1515 = scalar_lea.vmem %s7, %s1514
      $region60: #{merge_module_forward.1} parent=55 // pred_fallthru
        _
    $region56: #{merge_module_forward.1} parent=5 // pred_fallthru
      _
  $region6: #{merge_module_forward.1} parent=0 // loop_footer
    %s17 = sadd.s32 1, %s13
  $region7: #{merge_module_forward.1} parent=0 // loop_footer_branch
    %12 = sbr.rel target = $region3
  $region8: #{merge_module_forward.1} parent=0 // loop_exit
    _

</llo_original>
